<compile_context>
chip_gen: v6e
topology: v6e:2x2x1
jax: 0.10.0
libtpu: 0.0.40
codegen_flags: <defaults>
</compile_context>

<pallas_src>
import math

import jax
import jax.numpy as jnp
import numpy as np
from jax import lax
from jax.experimental import pallas as pl
from jax.experimental.pallas import tpu as pltpu


# -----------------------------------------------------------------------------
# Pallas kernel: one (batch, query-tile) block per grid step.
# -----------------------------------------------------------------------------
def _rel_mha_kernel(
    q_in_ref, k_in_ref, v_in_ref, p_ref, mask_ref,
    wq_t_ref, bq_ref, wk_t_ref, bk_ref, wv_t_ref, bv_ref,
    wout_h_ref, bout_ref, pbu_ref, pbv_ref,
    out_ref,
):
    TQ = q_in_ref.shape[1]          # query rows in this tile
    T = k_in_ref.shape[1]           # full key/value length (time2 == time1)
    L = p_ref.shape[1]              # 2*T - 1
    H, D = pbu_ref.shape
    F = q_in_ref.shape[2]
    scale = 1.0 / math.sqrt(D)
    q0 = pl.program_id(1) * TQ      # absolute index of first query row in tile

    query = q_in_ref[0]             # (TQ, F)
    key = k_in_ref[0]               # (T,  F)
    value = v_in_ref[0]             # (T,  F)
    keep = (mask_ref[0] > 0.5)[None]   # (1, 1, T); True = attend

    # ---- Q/K/V projections (weights pre-transposed to (in, out) host-side) ----
    q = jnp.dot(query, wq_t_ref[...], preferred_element_type=jnp.float32) + bq_ref[...]
    k = jnp.dot(key, wk_t_ref[...], preferred_element_type=jnp.float32) + bk_ref[...]
    v = jnp.dot(value, wv_t_ref[...], preferred_element_type=jnp.float32) + bv_ref[...]

    def split_heads(x):             # (rows, F) -> (H, rows, D), head-major split
        return jnp.concatenate(
            [x[None, :, h * D:(h + 1) * D] for h in range(H)], axis=0)

    q_hd = split_heads(q)           # (H, TQ, D)
    k_hd = split_heads(k)           # (H, T,  D)
    v_hd = split_heads(v)           # (H, T,  D)
    p_hd = p_ref[...]               # (H, L,  D)  (positional projection, hoisted)

    # positional biases added once for all heads (batched)
    q_u = q_hd + pbu_ref[...][:, None, :]      # (H, TQ, D)
    q_v = q_hd + pbv_ref[...][:, None, :]      # (H, TQ, D)

    # ---- attention score terms (batched over heads, contraction on last dims) ----
    matrix_ac = jnp.einsum('htd,hsd->hts', q_u, k_hd,
                           preferred_element_type=jnp.float32)   # (H, TQ, T)
    bd_full = jnp.einsum('htd,hld->htl', q_v, p_hd,
                         preferred_element_type=jnp.float32)     # (H, TQ, L)

    # ---- rel_shift: bd[h, i, j] = bd_full[h, i, (T-1 - (q0+i)) + j] ----
    # per-row left-rotation by (T-1 - absolute_row) via a log-depth barrel
    # shifter: log2(T) uniform lane rotations + per-row selects (O(T^2 log T)).
    row_local = lax.broadcasted_iota(jnp.int32, (1, TQ, 1), 1)
    shift_amt = (T - 1) - (row_local + q0)          # (1, TQ, 1), values in [0, T-1]
    x = bd_full
    if T > 1:
        nbits = (T - 1).bit_length()
        for b in range(nbits):
            s = 1 << b
            rolled = jnp.concatenate([x[..., s:], x[..., :s]], axis=-1)
            take = ((shift_amt >> b) & 1) == 1
            x = jnp.where(take, rolled, x)
    matrix_bd = x[..., :T]                           # (H, TQ, T)

    scores = (matrix_ac + matrix_bd) * scale         # (H, TQ, T)

    # ---- masked softmax (masked_fill(min) -> softmax -> masked_fill(0)) ----
    min_val = jnp.finfo(jnp.float32).min
    scores = jnp.where(keep, scores, min_val)
    s_max = jnp.max(scores, axis=-1, keepdims=True)
    e = jnp.exp(scores - s_max)
    denom = jnp.sum(e, axis=-1, keepdims=True)
    attn = e * pl.reciprocal(denom, approx=False)
    attn = jnp.where(keep, attn, 0.0)
    # TODO(synk): dropout on attn skipped (eval mode / rate 0.0); zero_triu=False assumed.

    # ---- context + output projection (per-head accumulate, no transposes) ----
    ctx = jnp.einsum('hts,hsd->htd', attn, v_hd,
                     preferred_element_type=jnp.float32)         # (H, TQ, D)
    acc = jnp.zeros((TQ, F), jnp.float32)
    for h in range(H):
        acc = acc + jnp.dot(ctx[h], wout_h_ref[h],
                            preferred_element_type=jnp.float32)  # (TQ, F)
    out = acc + bout_ref[...]
    out_ref[...] = out[None].astype(out_ref.dtype)


# -----------------------------------------------------------------------------
# Wrapper
# -----------------------------------------------------------------------------
def rel_position_mha(query, key, value, pos_emb, mask, params, q_tile=None):
    """query/key/value: (B, T, F); pos_emb: (1, 2T-1, F); mask: (B, 1, T) float {0,1}."""
    B, T, F = query.shape
    L = pos_emb.shape[1]
    H, D = params["pos_bias_u"].shape
    assert F == H * D and L == 2 * T - 1

    if q_tile is None:
        q_tile = T if T <= 128 else 128
    if T % q_tile != 0 or (q_tile != T and q_tile % 8 != 0):
        q_tile = T
    TQ = q_tile
    n_qt = T // TQ

    # Host-side, batch-invariant preprocessing (done once, outside the kernel):
    #  - transpose projection weights to (in, out),
    #  - split the output-projection weight per head -> (H, D, F),
    #  - hoist the positional projection and split it per head -> (H, L, D).
    wq_t = params["wq"].T
    wk_t = params["wk"].T
    wv_t = params["wv"].T
    wout_h = params["wout"].T.reshape(H, D, F)
    p_heads = (pos_emb[0] @ params["wp"].T).reshape(L, H, D).transpose(1, 0, 2)

    def full(a):
        return pl.BlockSpec(a.shape, lambda b, qi, _nd=a.ndim: (0,) * _nd)

    in_specs = [
        pl.BlockSpec((1, TQ, F), lambda b, qi: (b, qi, 0)),   # query tile
        pl.BlockSpec((1, T, F), lambda b, qi: (b, 0, 0)),     # key (full T)
        pl.BlockSpec((1, T, F), lambda b, qi: (b, 0, 0)),     # value (full T)
        pl.BlockSpec((H, L, D), lambda b, qi: (0, 0, 0)),     # pos projection (shared)
        pl.BlockSpec((1, 1, T), lambda b, qi: (b, 0, 0)),     # mask
        full(wq_t), full(params["bq"]),
        full(wk_t), full(params["bk"]),
        full(wv_t), full(params["bv"]),
        full(wout_h), full(params["bout"]),
        full(params["pos_bias_u"]), full(params["pos_bias_v"]),
    ]

    return pl.pallas_call(
        _rel_mha_kernel,
        out_shape=jax.ShapeDtypeStruct((B, T, F), jnp.float32),
        grid=(B, n_qt),
        in_specs=in_specs,
        out_specs=pl.BlockSpec((1, TQ, F), lambda b, qi: (b, qi, 0)),
        compiler_params=pltpu.CompilerParams(
            dimension_semantics=("parallel", "parallel"),
            vmem_limit_bytes=56 * 1024 * 1024,
        ),
    )(
        query, key, value, p_heads, mask,
        wq_t, params["bq"], wk_t, params["bk"], wv_t, params["bv"],
        wout_h, params["bout"],
        params["pos_bias_u"], params["pos_bias_v"],
    )


# -----------------------------------------------------------------------------
# Pure-JAX reference (mirrors the PyTorch module, eval mode)
# -----------------------------------------------------------------------------
def _rel_shift_ref(x):
    B, H, T, L = x.shape
    zero_pad = jnp.zeros((B, H, T, 1), x.dtype)
    xp = jnp.concatenate([zero_pad, x], axis=-1)        # (B, H, T, L+1)
    xp = xp.reshape(B, H, L + 1, T)
    x2 = xp[:, :, 1:].reshape(B, H, T, L)
    return x2[:, :, :, : L // 2 + 1]


def rel_position_mha_ref(query, key, value, pos_emb, mask, params):
    B, T, F = query.shape
    H, D = params["pos_bias_u"].shape

    def lin(x, w, b=None):
        y = x @ w.T
        return y if b is None else y + b

    q = lin(query, params["wq"], params["bq"]).reshape(B, T, H, D)
    k = lin(key, params["wk"], params["bk"]).reshape(B, T, H, D).transpose(0, 2, 1, 3)
    v = lin(value, params["wv"], params["bv"]).reshape(B, T, H, D).transpose(0, 2, 1, 3)
    p = lin(pos_emb, params["wp"]).reshape(pos_emb.shape[0], -1, H, D).transpose(0, 2, 1, 3)

    q_u = (q + params["pos_bias_u"]).transpose(0, 2, 1, 3)   # (B, H, T, D)
    q_v = (q + params["pos_bias_v"]).transpose(0, 2, 1, 3)

    matrix_ac = q_u @ k.transpose(0, 1, 3, 2)                # (B, H, T, T)
    matrix_bd = q_v @ p.transpose(0, 1, 3, 2)                # (B, H, T, 2T-1)
    matrix_bd = _rel_shift_ref(matrix_bd)
    scores = (matrix_ac + matrix_bd) / math.sqrt(D)

    m = (mask[:, None, :, :] == 0.0)                         # (B, 1, 1, T)
    min_val = jnp.finfo(scores.dtype).min
    scores = jnp.where(m, min_val, scores)
    attn = jax.nn.softmax(scores, axis=-1)
    attn = jnp.where(m, 0.0, attn)

    x = attn @ v                                             # (B, H, T, D)
    x = x.transpose(0, 2, 1, 3).reshape(B, T, H * D)
    return lin(x, params["wout"], params["bout"])


# -----------------------------------------------------------------------------
# Main
# -----------------------------------------------------------------------------
if __name__ == "__main__":
    def build_case(seed, B, T, F, H):
        D = F // H
        L = 2 * T - 1
        keys = jax.random.split(jax.random.PRNGKey(seed), 16)

        def rnd(k, shape, scale=0.1):
            return jax.random.normal(k, shape, dtype=jnp.float32) * scale

        params = {
            "wq": rnd(keys[0], (F, F)), "bq": rnd(keys[1], (1, F)),
            "wk": rnd(keys[2], (F, F)), "bk": rnd(keys[3], (1, F)),
            "wv": rnd(keys[4], (F, F)), "bv": rnd(keys[5], (1, F)),
            "wp": rnd(keys[6], (F, F)),
            "wout": rnd(keys[7], (F, F)), "bout": rnd(keys[8], (1, F)),
            "pos_bias_u": rnd(keys[9], (H, D), scale=math.sqrt(6.0 / (H + D))),
            "pos_bias_v": rnd(keys[10], (H, D), scale=math.sqrt(6.0 / (H + D))),
        }
        query = jax.random.normal(keys[11], (B, T, F), dtype=jnp.float32)
        key_t = jax.random.normal(keys[12], (B, T, F), dtype=jnp.float32)
        value = jax.random.normal(keys[13], (B, T, F), dtype=jnp.float32)
        pos_emb = jax.random.normal(keys[14], (1, L, F), dtype=jnp.float32)
        mask = jnp.ones((B, 1, T), dtype=jnp.float32)
        mask = mask.at[B - 1, 0, -2:].set(0.0)     # mask last two keys of last batch
        return params, query, key_t, value, pos_emb, mask

    # Case 1: toy shapes, single query tile.
    params, q, k, v, pe, m = build_case(0, B=2, T=8, F=32, H=4)
    out = jax.block_until_ready(rel_position_mha(q, k, v, pe, m, params))
    ref = rel_position_mha_ref(q, k, v, pe, m, params)
    np.testing.assert_allclose(np.asarray(out), np.asarray(ref), rtol=1e-4, atol=1e-4)

    # Case 2: multi-tile query grid (exercises (batch, q_tile) grid + rel_shift offsets).
    params, q, k, v, pe, m = build_case(1, B=2, T=16, F=32, H=4)
    out = jax.block_until_ready(rel_position_mha(q, k, v, pe, m, params, q_tile=8))
    ref = rel_position_mha_ref(q, k, v, pe, m, params)
    np.testing.assert_allclose(np.asarray(out), np.asarray(ref), rtol=1e-4, atol=1e-4)

    print("KERNEL_OK")
</pallas_src>

<mosaic_0001>
module attributes {stable_mosaic.version = 11 : i64} {
  func.func @_rel_mha_kernel(%arg0: i32, %arg1: i32, %arg2: memref<1x8x32xf32, #tpu.memory_space<vmem>>, %arg3: memref<1x8x32xf32, #tpu.memory_space<vmem>>, %arg4: memref<1x8x32xf32, #tpu.memory_space<vmem>>, %arg5: memref<4x15x8xf32, #tpu.memory_space<vmem>>, %arg6: memref<1x1x8xf32, #tpu.memory_space<vmem>>, %arg7: memref<32x32xf32, #tpu.memory_space<vmem>>, %arg8: memref<1x32xf32, #tpu.memory_space<vmem>>, %arg9: memref<32x32xf32, #tpu.memory_space<vmem>>, %arg10: memref<1x32xf32, #tpu.memory_space<vmem>>, %arg11: memref<32x32xf32, #tpu.memory_space<vmem>>, %arg12: memref<1x32xf32, #tpu.memory_space<vmem>>, %arg13: memref<4x8x32xf32, #tpu.memory_space<vmem>>, %arg14: memref<1x32xf32, #tpu.memory_space<vmem>>, %arg15: memref<4x8xf32, #tpu.memory_space<vmem>>, %arg16: memref<4x8xf32, #tpu.memory_space<vmem>>, %arg17: memref<1x8x32xf32, #tpu.memory_space<vmem>>) attributes {dimension_semantics = [#tpu.dimension_semantics<parallel>, #tpu.dimension_semantics<parallel>], iteration_bounds = array<i64: 2, 1>, scalar_prefetch = 0 : i64, scratch_operands = 0 : i64, tpu.core_type = #tpu.core_type<tc>, window_params = [{transform_indices = @transform_0, window_bounds = array<i64: 1, 8, 32>}, {transform_indices = @transform_1, window_bounds = array<i64: 1, 8, 32>}, {transform_indices = @transform_2, window_bounds = array<i64: 1, 8, 32>}, {pipeline_mode = #tpu.pipeline_mode<synchronous>, transform_indices = @transform_3, window_bounds = array<i64: 4, 15, 8>}, {transform_indices = @transform_4, window_bounds = array<i64: 1, 1, 8>}, {pipeline_mode = #tpu.pipeline_mode<synchronous>, transform_indices = @transform_5, window_bounds = array<i64: 32, 32>}, {pipeline_mode = #tpu.pipeline_mode<synchronous>, transform_indices = @transform_6, window_bounds = array<i64: 1, 32>}, {pipeline_mode = #tpu.pipeline_mode<synchronous>, transform_indices = @transform_7, window_bounds = array<i64: 32, 32>}, {pipeline_mode = #tpu.pipeline_mode<synchronous>, transform_indices = @transform_8, window_bounds = array<i64: 1, 32>}, {pipeline_mode = #tpu.pipeline_mode<synchronous>, transform_indices = @transform_9, window_bounds = array<i64: 32, 32>}, {pipeline_mode = #tpu.pipeline_mode<synchronous>, transform_indices = @transform_10, window_bounds = array<i64: 1, 32>}, {pipeline_mode = #tpu.pipeline_mode<synchronous>, transform_indices = @transform_11, window_bounds = array<i64: 4, 8, 32>}, {pipeline_mode = #tpu.pipeline_mode<synchronous>, transform_indices = @transform_12, window_bounds = array<i64: 1, 32>}, {pipeline_mode = #tpu.pipeline_mode<synchronous>, transform_indices = @transform_13, window_bounds = array<i64: 4, 8>}, {pipeline_mode = #tpu.pipeline_mode<synchronous>, transform_indices = @transform_14, window_bounds = array<i64: 4, 8>}, {transform_indices = @transform_15, window_bounds = array<i64: 1, 8, 32>}]} {
    %c8_i32 = arith.constant 8 : i32
    %0 = arith.muli %arg1, %c8_i32 : i32
    %c0 = arith.constant 0 : index
    %c0_0 = arith.constant 0 : index
    %c0_1 = arith.constant 0 : index
    %1 = vector.load %arg2[%c0, %c0_0, %c0_1] : memref<1x8x32xf32, #tpu.memory_space<vmem>>, vector<1x8x32xf32>
    %2 = vector.shape_cast %1 : vector<1x8x32xf32> to vector<8x32xf32>
    %c0_2 = arith.constant 0 : index
    %c0_3 = arith.constant 0 : index
    %c0_4 = arith.constant 0 : index
    %3 = vector.load %arg3[%c0_2, %c0_3, %c0_4] : memref<1x8x32xf32, #tpu.memory_space<vmem>>, vector<1x8x32xf32>
    %4 = vector.shape_cast %3 : vector<1x8x32xf32> to vector<8x32xf32>
    %c0_5 = arith.constant 0 : index
    %c0_6 = arith.constant 0 : index
    %c0_7 = arith.constant 0 : index
    %5 = vector.load %arg4[%c0_5, %c0_6, %c0_7] : memref<1x8x32xf32, #tpu.memory_space<vmem>>, vector<1x8x32xf32>
    %6 = vector.shape_cast %5 : vector<1x8x32xf32> to vector<8x32xf32>
    %c0_8 = arith.constant 0 : index
    %c0_9 = arith.constant 0 : index
    %c0_10 = arith.constant 0 : index
    %7 = vector.load %arg6[%c0_8, %c0_9, %c0_10] : memref<1x1x8xf32, #tpu.memory_space<vmem>>, vector<1x1x8xf32>
    %8 = vector.shape_cast %7 : vector<1x1x8xf32> to vector<1x8xf32>
    %cst = arith.constant 5.000000e-01 : f32
    %9 = vector.broadcast %cst : f32 to vector<1x8xf32>
    %10 = arith.cmpf ogt, %8, %9 : vector<1x8xf32>
    %11 = vector.shape_cast %10 : vector<1x8xi1> to vector<1x1x8xi1>
    %c0_11 = arith.constant 0 : index
    %c0_12 = arith.constant 0 : index
    %12 = vector.load %arg7[%c0_11, %c0_12] : memref<32x32xf32, #tpu.memory_space<vmem>>, vector<32x32xf32>
    %cst_13 = arith.constant dense<0.000000e+00> : vector<8x32xf32>
    %13 = tpu.matmul %2, %12, %cst_13 {dimension_numbers = #tpu.dot_dimension_numbers<[1], [0], [0], [1], [0, 0, 1, 1], [], []>} : vector<8x32xf32>, vector<32x32xf32>, vector<8x32xf32> -> vector<8x32xf32>
    %c0_14 = arith.constant 0 : index
    %c0_15 = arith.constant 0 : index
    %14 = vector.load %arg8[%c0_14, %c0_15] : memref<1x32xf32, #tpu.memory_space<vmem>>, vector<1x32xf32>
    %15 = vector.broadcast %14 : vector<1x32xf32> to vector<8x32xf32>
    %16 = arith.addf %13, %15 : vector<8x32xf32>
    %c0_16 = arith.constant 0 : index
    %c0_17 = arith.constant 0 : index
    %17 = vector.load %arg9[%c0_16, %c0_17] : memref<32x32xf32, #tpu.memory_space<vmem>>, vector<32x32xf32>
    %cst_18 = arith.constant dense<0.000000e+00> : vector<8x32xf32>
    %18 = tpu.matmul %4, %17, %cst_18 {dimension_numbers = #tpu.dot_dimension_numbers<[1], [0], [0], [1], [0, 0, 1, 1], [], []>} : vector<8x32xf32>, vector<32x32xf32>, vector<8x32xf32> -> vector<8x32xf32>
    %c0_19 = arith.constant 0 : index
    %c0_20 = arith.constant 0 : index
    %19 = vector.load %arg10[%c0_19, %c0_20] : memref<1x32xf32, #tpu.memory_space<vmem>>, vector<1x32xf32>
    %20 = vector.broadcast %19 : vector<1x32xf32> to vector<8x32xf32>
    %21 = arith.addf %18, %20 : vector<8x32xf32>
    %c0_21 = arith.constant 0 : index
    %c0_22 = arith.constant 0 : index
    %22 = vector.load %arg11[%c0_21, %c0_22] : memref<32x32xf32, #tpu.memory_space<vmem>>, vector<32x32xf32>
    %cst_23 = arith.constant dense<0.000000e+00> : vector<8x32xf32>
    %23 = tpu.matmul %6, %22, %cst_23 {dimension_numbers = #tpu.dot_dimension_numbers<[1], [0], [0], [1], [0, 0, 1, 1], [], []>} : vector<8x32xf32>, vector<32x32xf32>, vector<8x32xf32> -> vector<8x32xf32>
    %c0_24 = arith.constant 0 : index
    %c0_25 = arith.constant 0 : index
    %24 = vector.load %arg12[%c0_24, %c0_25] : memref<1x32xf32, #tpu.memory_space<vmem>>, vector<1x32xf32>
    %25 = vector.broadcast %24 : vector<1x32xf32> to vector<8x32xf32>
    %26 = arith.addf %23, %25 : vector<8x32xf32>
    %27 = vector.extract_strided_slice %16 {offsets = [0, 0], sizes = [8, 8], strides = [1, 1]} : vector<8x32xf32> to vector<8x8xf32>
    %28 = vector.shape_cast %27 : vector<8x8xf32> to vector<1x8x8xf32>
    %29 = vector.extract_strided_slice %16 {offsets = [0, 8], sizes = [8, 8], strides = [1, 1]} : vector<8x32xf32> to vector<8x8xf32>
    %30 = vector.shape_cast %29 : vector<8x8xf32> to vector<1x8x8xf32>
    %31 = vector.extract_strided_slice %16 {offsets = [0, 16], sizes = [8, 8], strides = [1, 1]} : vector<8x32xf32> to vector<8x8xf32>
    %32 = vector.shape_cast %31 : vector<8x8xf32> to vector<1x8x8xf32>
    %33 = vector.extract_strided_slice %16 {offsets = [0, 24], sizes = [8, 8], strides = [1, 1]} : vector<8x32xf32> to vector<8x8xf32>
    %34 = vector.shape_cast %33 : vector<8x8xf32> to vector<1x8x8xf32>
    %35 = tpu.concatenate %28, %30, %32, %34 in 0 : vector<1x8x8xf32>, vector<1x8x8xf32>, vector<1x8x8xf32>, vector<1x8x8xf32> -> vector<4x8x8xf32>
    %36 = vector.extract_strided_slice %21 {offsets = [0, 0], sizes = [8, 8], strides = [1, 1]} : vector<8x32xf32> to vector<8x8xf32>
    %37 = vector.shape_cast %36 : vector<8x8xf32> to vector<1x8x8xf32>
    %38 = vector.extract_strided_slice %21 {offsets = [0, 8], sizes = [8, 8], strides = [1, 1]} : vector<8x32xf32> to vector<8x8xf32>
    %39 = vector.shape_cast %38 : vector<8x8xf32> to vector<1x8x8xf32>
    %40 = vector.extract_strided_slice %21 {offsets = [0, 16], sizes = [8, 8], strides = [1, 1]} : vector<8x32xf32> to vector<8x8xf32>
    %41 = vector.shape_cast %40 : vector<8x8xf32> to vector<1x8x8xf32>
    %42 = vector.extract_strided_slice %21 {offsets = [0, 24], sizes = [8, 8], strides = [1, 1]} : vector<8x32xf32> to vector<8x8xf32>
    %43 = vector.shape_cast %42 : vector<8x8xf32> to vector<1x8x8xf32>
    %44 = tpu.concatenate %37, %39, %41, %43 in 0 : vector<1x8x8xf32>, vector<1x8x8xf32>, vector<1x8x8xf32>, vector<1x8x8xf32> -> vector<4x8x8xf32>
    %45 = vector.extract_strided_slice %26 {offsets = [0, 0], sizes = [8, 8], strides = [1, 1]} : vector<8x32xf32> to vector<8x8xf32>
    %46 = vector.shape_cast %45 : vector<8x8xf32> to vector<1x8x8xf32>
    %47 = vector.extract_strided_slice %26 {offsets = [0, 8], sizes = [8, 8], strides = [1, 1]} : vector<8x32xf32> to vector<8x8xf32>
    %48 = vector.shape_cast %47 : vector<8x8xf32> to vector<1x8x8xf32>
    %49 = vector.extract_strided_slice %26 {offsets = [0, 16], sizes = [8, 8], strides = [1, 1]} : vector<8x32xf32> to vector<8x8xf32>
    %50 = vector.shape_cast %49 : vector<8x8xf32> to vector<1x8x8xf32>
    %51 = vector.extract_strided_slice %26 {offsets = [0, 24], sizes = [8, 8], strides = [1, 1]} : vector<8x32xf32> to vector<8x8xf32>
    %52 = vector.shape_cast %51 : vector<8x8xf32> to vector<1x8x8xf32>
    %53 = tpu.concatenate %46, %48, %50, %52 in 0 : vector<1x8x8xf32>, vector<1x8x8xf32>, vector<1x8x8xf32>, vector<1x8x8xf32> -> vector<4x8x8xf32>
    %c0_26 = arith.constant 0 : index
    %c0_27 = arith.constant 0 : index
    %c0_28 = arith.constant 0 : index
    %54 = vector.load %arg5[%c0_26, %c0_27, %c0_28] : memref<4x15x8xf32, #tpu.memory_space<vmem>>, vector<4x15x8xf32>
    %c0_29 = arith.constant 0 : index
    %c0_30 = arith.constant 0 : index
    %55 = vector.load %arg15[%c0_29, %c0_30] : memref<4x8xf32, #tpu.memory_space<vmem>>, vector<4x8xf32>
    %56 = vector.shape_cast %55 : vector<4x8xf32> to vector<4x1x8xf32>
    %57 = vector.broadcast %56 : vector<4x1x8xf32> to vector<4x8x8xf32>
    %58 = arith.addf %35, %57 : vector<4x8x8xf32>
    %c0_31 = arith.constant 0 : index
    %c0_32 = arith.constant 0 : index
    %59 = vector.load %arg16[%c0_31, %c0_32] : memref<4x8xf32, #tpu.memory_space<vmem>>, vector<4x8xf32>
    %60 = vector.shape_cast %59 : vector<4x8xf32> to vector<4x1x8xf32>
    %61 = vector.broadcast %60 : vector<4x1x8xf32> to vector<4x8x8xf32>
    %62 = arith.addf %35, %61 : vector<4x8x8xf32>
    "tpu.trace_start"() <{level = 10 : i32, message = "htd,hsd->hts"}> : () -> ()
    %cst_33 = arith.constant dense<0.000000e+00> : vector<4x8x8xf32>
    %63 = tpu.matmul %58, %44, %cst_33 {dimension_numbers = #tpu.dot_dimension_numbers<[2], [2], [1], [1], [0, 0, 0, 1, 1, 1], [0], [0]>} : vector<4x8x8xf32>, vector<4x8x8xf32>, vector<4x8x8xf32> -> vector<4x8x8xf32>
    "tpu.trace_stop"() : () -> ()
    "tpu.trace_start"() <{level = 10 : i32, message = "htd,hld->htl"}> : () -> ()
    %cst_34 = arith.constant dense<0.000000e+00> : vector<4x8x15xf32>
    %64 = tpu.matmul %62, %54, %cst_34 {dimension_numbers = #tpu.dot_dimension_numbers<[2], [2], [1], [1], [0, 0, 0, 1, 1, 1], [0], [0]>} : vector<4x8x8xf32>, vector<4x15x8xf32>, vector<4x8x15xf32> -> vector<4x8x15xf32>
    "tpu.trace_stop"() : () -> ()
    %65 = tpu.iota {dimensions = array<i32: 1>} : vector<1x8x1xi32>
    %66 = vector.broadcast %0 : i32 to vector<1x8x1xi32>
    %67 = arith.addi %65, %66 : vector<1x8x1xi32>
    %c7_i32 = arith.constant 7 : i32
    %68 = vector.broadcast %c7_i32 : i32 to vector<1x8x1xi32>
    %69 = arith.subi %68, %67 : vector<1x8x1xi32>
    %70 = vector.extract_strided_slice %64 {offsets = [0, 0, 1], sizes = [4, 8, 14], strides = [1, 1, 1]} : vector<4x8x15xf32> to vector<4x8x14xf32>
    %71 = vector.extract_strided_slice %64 {offsets = [0, 0, 0], sizes = [4, 8, 1], strides = [1, 1, 1]} : vector<4x8x15xf32> to vector<4x8x1xf32>
    %72 = tpu.concatenate %70, %71 in 2 : vector<4x8x14xf32>, vector<4x8x1xf32> -> vector<4x8x15xf32>
    %c0_i32 = arith.constant 0 : i32
    %73 = vector.broadcast %c0_i32 : i32 to vector<1x8x1xi32>
    %74 = arith.shrsi %69, %73 : vector<1x8x1xi32>
    %c1_i32 = arith.constant 1 : i32
    %75 = vector.broadcast %c1_i32 : i32 to vector<1x8x1xi32>
    %76 = arith.andi %74, %75 : vector<1x8x1xi32>
    %c1_i32_35 = arith.constant 1 : i32
    %77 = vector.broadcast %c1_i32_35 : i32 to vector<1x8x1xi32>
    %78 = arith.cmpi eq, %76, %77 : vector<1x8x1xi32>
    %79 = vector.shape_cast %78 : vector<1x8x1xi1> to vector<1x8x1xi1>
    %80 = vector.broadcast %79 : vector<1x8x1xi1> to vector<4x8x15xi1>
    %81 = arith.select %80, %72, %64 : vector<4x8x15xi1>, vector<4x8x15xf32>
    %82 = vector.extract_strided_slice %81 {offsets = [0, 0, 2], sizes = [4, 8, 13], strides = [1, 1, 1]} : vector<4x8x15xf32> to vector<4x8x13xf32>
    %83 = vector.extract_strided_slice %81 {offsets = [0, 0, 0], sizes = [4, 8, 2], strides = [1, 1, 1]} : vector<4x8x15xf32> to vector<4x8x2xf32>
    %84 = tpu.concatenate %82, %83 in 2 : vector<4x8x13xf32>, vector<4x8x2xf32> -> vector<4x8x15xf32>
    %c1_i32_36 = arith.constant 1 : i32
    %85 = vector.broadcast %c1_i32_36 : i32 to vector<1x8x1xi32>
    %86 = arith.shrsi %69, %85 : vector<1x8x1xi32>
    %c1_i32_37 = arith.constant 1 : i32
    %87 = vector.broadcast %c1_i32_37 : i32 to vector<1x8x1xi32>
    %88 = arith.andi %86, %87 : vector<1x8x1xi32>
    %c1_i32_38 = arith.constant 1 : i32
    %89 = vector.broadcast %c1_i32_38 : i32 to vector<1x8x1xi32>
    %90 = arith.cmpi eq, %88, %89 : vector<1x8x1xi32>
    %91 = vector.shape_cast %90 : vector<1x8x1xi1> to vector<1x8x1xi1>
    %92 = vector.broadcast %91 : vector<1x8x1xi1> to vector<4x8x15xi1>
    %93 = arith.select %92, %84, %81 : vector<4x8x15xi1>, vector<4x8x15xf32>
    %94 = vector.extract_strided_slice %93 {offsets = [0, 0, 4], sizes = [4, 8, 11], strides = [1, 1, 1]} : vector<4x8x15xf32> to vector<4x8x11xf32>
    %95 = vector.extract_strided_slice %93 {offsets = [0, 0, 0], sizes = [4, 8, 4], strides = [1, 1, 1]} : vector<4x8x15xf32> to vector<4x8x4xf32>
    %96 = tpu.concatenate %94, %95 in 2 : vector<4x8x11xf32>, vector<4x8x4xf32> -> vector<4x8x15xf32>
    %c2_i32 = arith.constant 2 : i32
    %97 = vector.broadcast %c2_i32 : i32 to vector<1x8x1xi32>
    %98 = arith.shrsi %69, %97 : vector<1x8x1xi32>
    %c1_i32_39 = arith.constant 1 : i32
    %99 = vector.broadcast %c1_i32_39 : i32 to vector<1x8x1xi32>
    %100 = arith.andi %98, %99 : vector<1x8x1xi32>
    %c1_i32_40 = arith.constant 1 : i32
    %101 = vector.broadcast %c1_i32_40 : i32 to vector<1x8x1xi32>
    %102 = arith.cmpi eq, %100, %101 : vector<1x8x1xi32>
    %103 = vector.shape_cast %102 : vector<1x8x1xi1> to vector<1x8x1xi1>
    %104 = vector.broadcast %103 : vector<1x8x1xi1> to vector<4x8x15xi1>
    %105 = arith.select %104, %96, %93 : vector<4x8x15xi1>, vector<4x8x15xf32>
    %106 = vector.extract_strided_slice %105 {offsets = [0, 0, 0], sizes = [4, 8, 8], strides = [1, 1, 1]} : vector<4x8x15xf32> to vector<4x8x8xf32>
    %107 = arith.addf %63, %106 : vector<4x8x8xf32>
    %cst_41 = arith.constant 0.353553385 : f32
    %108 = vector.broadcast %cst_41 : f32 to vector<4x8x8xf32>
    %109 = arith.mulf %107, %108 : vector<4x8x8xf32>
    %cst_42 = arith.constant -3.40282347E+38 : f32
    %110 = vector.shape_cast %11 : vector<1x1x8xi1> to vector<1x1x8xi1>
    %111 = vector.broadcast %110 : vector<1x1x8xi1> to vector<4x8x8xi1>
    %112 = vector.broadcast %cst_42 : f32 to vector<4x8x8xf32>
    %113 = arith.select %111, %109, %112 : vector<4x8x8xi1>, vector<4x8x8xf32>
    %cst_43 = arith.constant dense<0xFF800000> : vector<4x8xf32>
    %114 = vector.multi_reduction <maximumf>, %113, %cst_43 [2] : vector<4x8x8xf32> to vector<4x8xf32>
    %115 = vector.shape_cast %114 : vector<4x8xf32> to vector<4x8x1xf32>
    %116 = vector.broadcast %115 : vector<4x8x1xf32> to vector<4x8x8xf32>
    %117 = arith.subf %113, %116 : vector<4x8x8xf32>
    %118 = math.exp %117 : vector<4x8x8xf32>
    %cst_44 = arith.constant dense<0.000000e+00> : vector<4x8xf32>
    %119 = vector.multi_reduction <add>, %118, %cst_44 [2] : vector<4x8x8xf32> to vector<4x8xf32>
    %120 = vector.shape_cast %119 : vector<4x8xf32> to vector<4x8x1xf32>
    %121 = tpu.reciprocal %120 : vector<4x8x1xf32> -> vector<4x8x1xf32>
    %122 = vector.broadcast %121 : vector<4x8x1xf32> to vector<4x8x8xf32>
    %123 = arith.mulf %118, %122 : vector<4x8x8xf32>
    %cst_45 = arith.constant 0.000000e+00 : f32
    %124 = vector.shape_cast %11 : vector<1x1x8xi1> to vector<1x1x8xi1>
    %125 = vector.broadcast %124 : vector<1x1x8xi1> to vector<4x8x8xi1>
    %126 = vector.broadcast %cst_45 : f32 to vector<4x8x8xf32>
    %127 = arith.select %125, %123, %126 : vector<4x8x8xi1>, vector<4x8x8xf32>
    "tpu.trace_start"() <{level = 10 : i32, message = "hts,hsd->htd"}> : () -> ()
    %cst_46 = arith.constant dense<0.000000e+00> : vector<4x8x8xf32>
    %128 = tpu.matmul %127, %53, %cst_46 {dimension_numbers = #tpu.dot_dimension_numbers<[2], [1], [1], [2], [0, 0, 0, 1, 1, 2], [0], [0]>} : vector<4x8x8xf32>, vector<4x8x8xf32>, vector<4x8x8xf32> -> vector<4x8x8xf32>
    %cst_47 = arith.constant 0.000000e+00 : f32
    "tpu.trace_stop"() : () -> ()
    %129 = vector.broadcast %cst_47 : f32 to vector<8x32xf32>
    %130 = vector.extract_strided_slice %128 {offsets = [0, 0, 0], sizes = [1, 8, 8], strides = [1, 1, 1]} : vector<4x8x8xf32> to vector<1x8x8xf32>
    %131 = vector.shape_cast %130 : vector<1x8x8xf32> to vector<8x8xf32>
    %c0_48 = arith.constant 0 : index
    %c0_49 = arith.constant 0 : index
    %c0_50 = arith.constant 0 : index
    %132 = vector.load %arg13[%c0_48, %c0_49, %c0_50] : memref<4x8x32xf32, #tpu.memory_space<vmem>>, vector<1x8x32xf32>
    %133 = vector.shape_cast %132 : vector<1x8x32xf32> to vector<8x32xf32>
    %cst_51 = arith.constant dense<0.000000e+00> : vector<8x32xf32>
    %134 = tpu.matmul %131, %133, %cst_51 {dimension_numbers = #tpu.dot_dimension_numbers<[1], [0], [0], [1], [0, 0, 1, 1], [], []>} : vector<8x8xf32>, vector<8x32xf32>, vector<8x32xf32> -> vector<8x32xf32>
    %135 = arith.addf %129, %134 : vector<8x32xf32>
    %136 = vector.extract_strided_slice %128 {offsets = [1, 0, 0], sizes = [1, 8, 8], strides = [1, 1, 1]} : vector<4x8x8xf32> to vector<1x8x8xf32>
    %137 = vector.shape_cast %136 : vector<1x8x8xf32> to vector<8x8xf32>
    %c1 = arith.constant 1 : index
    %c0_52 = arith.constant 0 : index
    %c0_53 = arith.constant 0 : index
    %138 = vector.load %arg13[%c1, %c0_52, %c0_53] : memref<4x8x32xf32, #tpu.memory_space<vmem>>, vector<1x8x32xf32>
    %139 = vector.shape_cast %138 : vector<1x8x32xf32> to vector<8x32xf32>
    %cst_54 = arith.constant dense<0.000000e+00> : vector<8x32xf32>
    %140 = tpu.matmul %137, %139, %cst_54 {dimension_numbers = #tpu.dot_dimension_numbers<[1], [0], [0], [1], [0, 0, 1, 1], [], []>} : vector<8x8xf32>, vector<8x32xf32>, vector<8x32xf32> -> vector<8x32xf32>
    %141 = arith.addf %135, %140 : vector<8x32xf32>
    %142 = vector.extract_strided_slice %128 {offsets = [2, 0, 0], sizes = [1, 8, 8], strides = [1, 1, 1]} : vector<4x8x8xf32> to vector<1x8x8xf32>
    %143 = vector.shape_cast %142 : vector<1x8x8xf32> to vector<8x8xf32>
    %c2 = arith.constant 2 : index
    %c0_55 = arith.constant 0 : index
    %c0_56 = arith.constant 0 : index
    %144 = vector.load %arg13[%c2, %c0_55, %c0_56] : memref<4x8x32xf32, #tpu.memory_space<vmem>>, vector<1x8x32xf32>
    %145 = vector.shape_cast %144 : vector<1x8x32xf32> to vector<8x32xf32>
    %cst_57 = arith.constant dense<0.000000e+00> : vector<8x32xf32>
    %146 = tpu.matmul %143, %145, %cst_57 {dimension_numbers = #tpu.dot_dimension_numbers<[1], [0], [0], [1], [0, 0, 1, 1], [], []>} : vector<8x8xf32>, vector<8x32xf32>, vector<8x32xf32> -> vector<8x32xf32>
    %147 = arith.addf %141, %146 : vector<8x32xf32>
    %148 = vector.extract_strided_slice %128 {offsets = [3, 0, 0], sizes = [1, 8, 8], strides = [1, 1, 1]} : vector<4x8x8xf32> to vector<1x8x8xf32>
    %149 = vector.shape_cast %148 : vector<1x8x8xf32> to vector<8x8xf32>
    %c3 = arith.constant 3 : index
    %c0_58 = arith.constant 0 : index
    %c0_59 = arith.constant 0 : index
    %150 = vector.load %arg13[%c3, %c0_58, %c0_59] : memref<4x8x32xf32, #tpu.memory_space<vmem>>, vector<1x8x32xf32>
    %151 = vector.shape_cast %150 : vector<1x8x32xf32> to vector<8x32xf32>
    %cst_60 = arith.constant dense<0.000000e+00> : vector<8x32xf32>
    %152 = tpu.matmul %149, %151, %cst_60 {dimension_numbers = #tpu.dot_dimension_numbers<[1], [0], [0], [1], [0, 0, 1, 1], [], []>} : vector<8x8xf32>, vector<8x32xf32>, vector<8x32xf32> -> vector<8x32xf32>
    %153 = arith.addf %147, %152 : vector<8x32xf32>
    %c0_61 = arith.constant 0 : index
    %c0_62 = arith.constant 0 : index
    %154 = vector.load %arg14[%c0_61, %c0_62] : memref<1x32xf32, #tpu.memory_space<vmem>>, vector<1x32xf32>
    %155 = vector.broadcast %154 : vector<1x32xf32> to vector<8x32xf32>
    %156 = arith.addf %153, %155 : vector<8x32xf32>
    %157 = vector.shape_cast %156 : vector<8x32xf32> to vector<1x8x32xf32>
    %c0_63 = arith.constant 0 : index
    %c0_64 = arith.constant 0 : index
    %c0_65 = arith.constant 0 : index
    %158 = vector.load %arg17[%c0_63, %c0_64, %c0_65] : memref<1x8x32xf32, #tpu.memory_space<vmem>>, vector<1x8x32xf32>
    tpu.vector_store %arg17[%c0_63, %c0_64, %c0_65], %157 {strides = array<i32>} : memref<1x8x32xf32, #tpu.memory_space<vmem>>, vector<1x8x32xf32>,
    return
  }
  func.func @transform_0(%arg0: i32, %arg1: i32) -> (i32, i32, i32) {
    %c0_i32 = arith.constant 0 : i32
    %c0_i32_0 = arith.constant 0 : i32
    return %arg0, %arg1, %c0_i32 : i32, i32, i32
  }
  func.func @transform_1(%arg0: i32, %arg1: i32) -> (i32, i32, i32) {
    %c0_i32 = arith.constant 0 : i32
    %c0_i32_0 = arith.constant 0 : i32
    %c0_i32_1 = arith.constant 0 : i32
    return %arg0, %c0_i32, %c0_i32_0 : i32, i32, i32
  }
  func.func @transform_2(%arg0: i32, %arg1: i32) -> (i32, i32, i32) {
    %c0_i32 = arith.constant 0 : i32
    %c0_i32_0 = arith.constant 0 : i32
    %c0_i32_1 = arith.constant 0 : i32
    return %arg0, %c0_i32, %c0_i32_0 : i32, i32, i32
  }
  func.func @transform_3(%arg0: i32, %arg1: i32) -> (i32, i32, i32) {
    %c0_i32 = arith.constant 0 : i32
    %c0_i32_0 = arith.constant 0 : i32
    %c0_i32_1 = arith.constant 0 : i32
    %c0_i32_2 = arith.constant 0 : i32
    return %c0_i32, %c0_i32_0, %c0_i32_1 : i32, i32, i32
  }
  func.func @transform_4(%arg0: i32, %arg1: i32) -> (i32, i32, i32) {
    %c0_i32 = arith.constant 0 : i32
    %c0_i32_0 = arith.constant 0 : i32
    %c0_i32_1 = arith.constant 0 : i32
    return %arg0, %c0_i32, %c0_i32_0 : i32, i32, i32
  }
  func.func @transform_5(%arg0: i32, %arg1: i32) -> (i32, i32) {
    %c0_i32 = arith.constant 0 : i32
    %c0_i32_0 = arith.constant 0 : i32
    %c0_i32_1 = arith.constant 0 : i32
    return %c0_i32, %c0_i32_0 : i32, i32
  }
  func.func @transform_6(%arg0: i32, %arg1: i32) -> (i32, i32) {
    %c0_i32 = arith.constant 0 : i32
    %c0_i32_0 = arith.constant 0 : i32
    %c0_i32_1 = arith.constant 0 : i32
    return %c0_i32, %c0_i32_0 : i32, i32
  }
  func.func @transform_7(%arg0: i32, %arg1: i32) -> (i32, i32) {
    %c0_i32 = arith.constant 0 : i32
    %c0_i32_0 = arith.constant 0 : i32
    %c0_i32_1 = arith.constant 0 : i32
    return %c0_i32, %c0_i32_0 : i32, i32
  }
  func.func @transform_8(%arg0: i32, %arg1: i32) -> (i32, i32) {
    %c0_i32 = arith.constant 0 : i32
    %c0_i32_0 = arith.constant 0 : i32
    %c0_i32_1 = arith.constant 0 : i32
    return %c0_i32, %c0_i32_0 : i32, i32
  }
  func.func @transform_9(%arg0: i32, %arg1: i32) -> (i32, i32) {
    %c0_i32 = arith.constant 0 : i32
    %c0_i32_0 = arith.constant 0 : i32
    %c0_i32_1 = arith.constant 0 : i32
    return %c0_i32, %c0_i32_0 : i32, i32
  }
  func.func @transform_10(%arg0: i32, %arg1: i32) -> (i32, i32) {
    %c0_i32 = arith.constant 0 : i32
    %c0_i32_0 = arith.constant 0 : i32
    %c0_i32_1 = arith.constant 0 : i32
    return %c0_i32, %c0_i32_0 : i32, i32
  }
  func.func @transform_11(%arg0: i32, %arg1: i32) -> (i32, i32, i32) {
    %c0_i32 = arith.constant 0 : i32
    %c0_i32_0 = arith.constant 0 : i32
    %c0_i32_1 = arith.constant 0 : i32
    %c0_i32_2 = arith.constant 0 : i32
    return %c0_i32, %c0_i32_0, %c0_i32_1 : i32, i32, i32
  }
  func.func @transform_12(%arg0: i32, %arg1: i32) -> (i32, i32) {
    %c0_i32 = arith.constant 0 : i32
    %c0_i32_0 = arith.constant 0 : i32
    %c0_i32_1 = arith.constant 0 : i32
    return %c0_i32, %c0_i32_0 : i32, i32
  }
  func.func @transform_13(%arg0: i32, %arg1: i32) -> (i32, i32) {
    %c0_i32 = arith.constant 0 : i32
    %c0_i32_0 = arith.constant 0 : i32
    %c0_i32_1 = arith.constant 0 : i32
    return %c0_i32, %c0_i32_0 : i32, i32
  }
  func.func @transform_14(%arg0: i32, %arg1: i32) -> (i32, i32) {
    %c0_i32 = arith.constant 0 : i32
    %c0_i32_0 = arith.constant 0 : i32
    %c0_i32_1 = arith.constant 0 : i32
    return %c0_i32, %c0_i32_0 : i32, i32
  }
  func.func @transform_15(%arg0: i32, %arg1: i32) -> (i32, i32, i32) {
    %c0_i32 = arith.constant 0 : i32
    %c0_i32_0 = arith.constant 0 : i32
    return %arg0, %arg1, %c0_i32 : i32, i32, i32
  }
}

</mosaic_0001>

<llo_original>
// kernel: tpu_custom_call.1
$region0: #{tpu_custom_call.1}
  #allocation0 [shape = 'u32[]', space=smem, size = 0x4, offset = 0x4, fixed_abs, tag = 'smem constant byte address 0x4 - core index']
  #allocation1 [shape = 'u32[144,128]{1,0:T(1,128)}', space=vmem, size = 0x12000, scoped, tag = 'internal scratch']
  %s0 = inlined_call_operand.hbm [shape: f32[2,8,32], index: 0, kind: input, shape index: {}]
  %s1 = inlined_call_operand.hbm [shape: f32[2,8,32], index: 1, kind: input, shape index: {}]
  %s2 = inlined_call_operand.hbm [shape: f32[2,8,32], index: 2, kind: input, shape index: {}]
  %s3 = inlined_call_operand.vmem [shape: f32[4,15,8], index: 3, kind: input, shape index: {}]
  %s4 = inlined_call_operand.hbm [shape: f32[2,1,8], index: 4, kind: input, shape index: {}]
  %s5 = inlined_call_operand.vmem [shape: f32[32,32], index: 5, kind: input, shape index: {}]
  %s6 = inlined_call_operand.vmem [shape: f32[1,32], index: 6, kind: input, shape index: {}]
  %s7 = inlined_call_operand.vmem [shape: f32[32,32], index: 7, kind: input, shape index: {}]
  %s8 = inlined_call_operand.vmem [shape: f32[1,32], index: 8, kind: input, shape index: {}]
  %s9 = inlined_call_operand.vmem [shape: f32[32,32], index: 9, kind: input, shape index: {}]
  %s10 = inlined_call_operand.vmem [shape: f32[1,32], index: 10, kind: input, shape index: {}]
  %s11 = inlined_call_operand.hbm [shape: f32[4,8,32], index: 11, kind: input, shape index: {}]
  %s12 = inlined_call_operand.vmem [shape: f32[1,32], index: 12, kind: input, shape index: {}]
  %s13 = inlined_call_operand.vmem [shape: f32[4,8], index: 13, kind: input, shape index: {}]
  %s14 = inlined_call_operand.vmem [shape: f32[4,8], index: 14, kind: input, shape index: {}]
  %s15 = inlined_call_operand.hbm [shape: f32[2,8,32], index: 15, kind: output, shape index: {}]
  %s16 = sld [smem:[#allocation0]]
  $region113: #{tpu_custom_call.1} parent=0
    _
  %s18 = ssub.s32 1, %s16
  %s19 = scalar_select 0, %s18, %s16
  $region1: #{tpu_custom_call.1} parent=0
    #allocation2 [shape = 'u8[8192]{0}', space=vmem, size = 0x2000, scoped, tag = 'input window, operand 0']
    #allocation3 [shape = 's32[2]{0}', space=sflag, size = 0x8, scoped, tag = 'scoped memory for tpu_custom_call.1']
    #allocation4 [shape = 's32[2]{0}', space=sflag, size = 0x8, scoped, tag = 'scoped memory for tpu_custom_call.1']
    #allocation5 [shape = 'u8[8192]{0}', space=vmem, size = 0x2000, scoped, tag = 'input window, operand 1']
    #allocation6 [shape = 's32[2]{0}', space=sflag, size = 0x8, scoped, tag = 'scoped memory for tpu_custom_call.1']
    #allocation7 [shape = 'u8[8192]{0}', space=vmem, size = 0x2000, scoped, tag = 'input window, operand 2']
    #allocation8 [shape = 'u8[1024]{0}', space=vmem, size = 0x400, scoped, tag = 'input window, operand 4']
    #allocation9 [shape = 's32[2]{0}', space=sflag, size = 0x8, scoped, tag = 'scoped memory for tpu_custom_call.1']
    #allocation10 [shape = 'u8[16384]{0}', space=vmem, size = 0x4000, scoped, tag = 'input window, operand 11, single buffered']
    #allocation11 [shape = 'u8[8192]{0}', space=vmem, size = 0x2000, scoped, tag = 'output window, operand 0']
    %20 = vsyncpa [#allocation3], 0
    %s21 = scalar_lea.sflag [#allocation3], 1
    %22 = vsyncpa %s21, 0
    %23 = vsyncpa [#allocation6], 0
    %s24 = scalar_lea.sflag [#allocation6], 1
    %25 = vsyncpa %s24, 0
    %26 = vsyncpa [#allocation9], 0
    %s27 = scalar_lea.sflag [#allocation9], 1
    %28 = vsyncpa %s27, 0
    %29 = vsyncpa [#allocation4], 0
    %s30 = scalar_lea.sflag [#allocation4], 1
    %31 = vsyncpa %s30, 0
    loop: start=0, step=1, limit=4
    $region2: #{tpu_custom_call.1} parent=1 // loop_pre_header
      _
    $region3: #{tpu_custom_call.1} parent=1 // loop_header
      %s33 = sphi 0, %s37
      %p34 = scmp.ge.s32.totalorder %s33, 4
      %s40 = sphi 0, %s52
      %s41 = sphi 0, %s48
      %s42 = sphi 0, %s40
      %s43 = sphi 0, %s41
      %s44 = sphi 0, %s42
      %s45 = sphi 0, %s43
      %s57 = sphi 0, %s59
      %s60 = sphi 0, %s57
      %s61 = sphi 0, %s60
      %s77 = sphi 0, %s61
      %s83 = sphi 0, %s85
      %s86 = sphi 0, %s83
      %s87 = sphi 0, %s86
      %s103 = sphi 0, %s87
      %s109 = sphi 0, %s111
      %s112 = sphi 0, %s109
      %s113 = sphi 0, %s112
      %s129 = sphi 0, %s113
      %s133 = sphi 0, %s133
      %s135 = sphi 0, %s133
      %s136 = sphi 0, %s135
      %s150 = sphi 0, %s136
      %s156 = sphi 0, %s158
      %s159 = sphi 0, %s156
      %s160 = sphi 0, %s159
      %s176 = sphi 0, %s160
      %s180 = sphi 0, %s180
      %s182 = sphi 0, %s180
      %s183 = sphi 0, %s182
      %s197 = sphi 0, %s183
      %s201 = sphi 0, %s201
      %s203 = sphi 0, %s201
      %s204 = sphi 0, %s203
      %s218 = sphi 0, %s204
      %s222 = sphi 0, %s222
      %s224 = sphi 0, %s222
      %s225 = sphi 0, %s224
      %s239 = sphi 0, %s225
      %s243 = sphi 0, %s243
      %s245 = sphi 0, %s243
      %s246 = sphi 0, %s245
      %s260 = sphi 0, %s246
      %s264 = sphi 0, %s264
      %s266 = sphi 0, %s264
      %s267 = sphi 0, %s266
      %s281 = sphi 0, %s267
      %s285 = sphi 0, %s285
      %s287 = sphi 0, %s285
      %s288 = sphi 0, %s287
      %s302 = sphi 0, %s288
      %s306 = sphi 0, %s306
      %s308 = sphi 0, %s306
      %s309 = sphi 0, %s308
      %s323 = sphi 0, %s309
      %s327 = sphi 0, %s327
      %s329 = sphi 0, %s327
      %s330 = sphi 0, %s329
      %s344 = sphi 0, %s330
      %s348 = sphi 0, %s348
      %s350 = sphi 0, %s348
      %s351 = sphi 0, %s350
      %s365 = sphi 0, %s351
      %s369 = sphi 0, %s369
      %s371 = sphi 0, %s369
      %s372 = sphi 0, %s371
      %s386 = sphi 0, %s372
      %s394 = sphi 0, %s396
      %s397 = sphi 0, %s394
      %s398 = sphi 0, %s397
      %s414 = sphi 0, %s398
    $region4: #{tpu_custom_call.1} parent=1 // loop_header_branch
      %36 = sbr.rel (%p34) target = $region8
    $region5: #{tpu_custom_call.1} parent=1 // loop_body
      %s38 = ssub.s32 %s33, 1
      %s39 = ssub.s32 %s33, 2
      %s46 = sadd.s32 1, %s41
      %p47 = scmp.ge.s32.totalorder %s46, 1
      %s48 = scalar_select %p47, 0, %s46
      %s49 = sadd.s32 1, %s40
      %s50 = scalar_select %p47, %s49, %s40
      %p51 = scmp.ge.s32.totalorder %s50, 2
      %s52 = scalar_select %p51, 0, %s50
      %s53 = ssub.s32 %s40, %s52
      %s54 = ssub.s32 %s41, %s48
      %s55 = sor.u32 %s53, %s54
      %p56 = scmp.eq.s32.totalorder %s55, 0
      %s58 = sadd.s32 %s57, 1
      %s59 = scalar_select %p56, %s57, %s58
      %p62 = pneg %p56
      %p63 = scmp.eq.s32.totalorder %s33, 1
      %p64 = por %p62, %p63
      %p65 = scmp.ne.s32.totalorder %s57, %s60
      %p66 = scmp.eq.s32.totalorder %s33, 0
      %p67 = por %p65, %p66
      %p68 = scmp.ne.s32.totalorder %s57, %s60
      %p69 = scmp.eq.s32.totalorder %s38, 1
      %p70 = por %p68, %p69
      %p71 = scmp.ne.s32.totalorder %s60, %s61
      %p72 = scmp.eq.s32.totalorder %s38, 0
      %p73 = por %p71, %p72
      %p74 = scmp.ne.s32.totalorder %s60, %s61
      %p75 = scmp.eq.s32.totalorder %s39, 1
      %p76 = por %p74, %p75
      %p78 = scmp.ne.s32.totalorder %s61, %s77
      %p79 = scmp.eq.s32.totalorder %s39, 0
      %p80 = por %p78, %p79
      %s81 = ssub.s32 %s40, %s52
      %p82 = scmp.eq.s32.totalorder %s81, 0
      %s84 = sadd.s32 %s83, 1
      %s85 = scalar_select %p82, %s83, %s84
      %p88 = pneg %p82
      %p89 = scmp.eq.s32.totalorder %s33, 1
      %p90 = por %p88, %p89
      %p91 = scmp.ne.s32.totalorder %s83, %s86
      %p92 = scmp.eq.s32.totalorder %s33, 0
      %p93 = por %p91, %p92
      %p94 = scmp.ne.s32.totalorder %s83, %s86
      %p95 = scmp.eq.s32.totalorder %s38, 1
      %p96 = por %p94, %p95
      %p97 = scmp.ne.s32.totalorder %s86, %s87
      %p98 = scmp.eq.s32.totalorder %s38, 0
      %p99 = por %p97, %p98
      %p100 = scmp.ne.s32.totalorder %s86, %s87
      %p101 = scmp.eq.s32.totalorder %s39, 1
      %p102 = por %p100, %p101
      %p104 = scmp.ne.s32.totalorder %s87, %s103
      %p105 = scmp.eq.s32.totalorder %s39, 0
      %p106 = por %p104, %p105
      %s107 = ssub.s32 %s40, %s52
      %p108 = scmp.eq.s32.totalorder %s107, 0
      %s110 = sadd.s32 %s109, 1
      %s111 = scalar_select %p108, %s109, %s110
      %p114 = pneg %p108
      %p115 = scmp.eq.s32.totalorder %s33, 1
      %p116 = por %p114, %p115
      %p117 = scmp.ne.s32.totalorder %s109, %s112
      %p118 = scmp.eq.s32.totalorder %s33, 0
      %p119 = por %p117, %p118
      %p120 = scmp.ne.s32.totalorder %s109, %s112
      %p121 = scmp.eq.s32.totalorder %s38, 1
      %p122 = por %p120, %p121
      %p123 = scmp.ne.s32.totalorder %s112, %s113
      %p124 = scmp.eq.s32.totalorder %s38, 0
      %p125 = por %p123, %p124
      %p126 = scmp.ne.s32.totalorder %s112, %s113
      %p127 = scmp.eq.s32.totalorder %s39, 1
      %p128 = por %p126, %p127
      %p130 = scmp.ne.s32.totalorder %s113, %s129
      %p131 = scmp.eq.s32.totalorder %s39, 0
      %p132 = por %p130, %p131
      %s134 = sadd.s32 %s133, 1
      %p137 = scmp.eq.s32.totalorder %s33, 1
      %p138 = scmp.ne.s32.totalorder %s133, %s135
      %p139 = scmp.eq.s32.totalorder %s33, 0
      %p140 = por %p138, %p139
      %p141 = scmp.ne.s32.totalorder %s133, %s135
      %p142 = scmp.eq.s32.totalorder %s38, 1
      %p143 = por %p141, %p142
      %p144 = scmp.ne.s32.totalorder %s135, %s136
      %p145 = scmp.eq.s32.totalorder %s38, 0
      %p146 = por %p144, %p145
      %p147 = scmp.ne.s32.totalorder %s135, %s136
      %p148 = scmp.eq.s32.totalorder %s39, 1
      %p149 = por %p147, %p148
      %p151 = scmp.ne.s32.totalorder %s136, %s150
      %p152 = scmp.eq.s32.totalorder %s39, 0
      %p153 = por %p151, %p152
      %s154 = ssub.s32 %s40, %s52
      %p155 = scmp.eq.s32.totalorder %s154, 0
      %s157 = sadd.s32 %s156, 1
      %s158 = scalar_select %p155, %s156, %s157
      %p161 = pneg %p155
      %p162 = scmp.eq.s32.totalorder %s33, 1
      %p163 = por %p161, %p162
      %p164 = scmp.ne.s32.totalorder %s156, %s159
      %p165 = scmp.eq.s32.totalorder %s33, 0
      %p166 = por %p164, %p165
      %p167 = scmp.ne.s32.totalorder %s156, %s159
      %p168 = scmp.eq.s32.totalorder %s38, 1
      %p169 = por %p167, %p168
      %p170 = scmp.ne.s32.totalorder %s159, %s160
      %p171 = scmp.eq.s32.totalorder %s38, 0
      %p172 = por %p170, %p171
      %p173 = scmp.ne.s32.totalorder %s159, %s160
      %p174 = scmp.eq.s32.totalorder %s39, 1
      %p175 = por %p173, %p174
      %p177 = scmp.ne.s32.totalorder %s160, %s176
      %p178 = scmp.eq.s32.totalorder %s39, 0
      %p179 = por %p177, %p178
      %s181 = sadd.s32 %s180, 1
      %p184 = scmp.eq.s32.totalorder %s33, 1
      %p185 = scmp.ne.s32.totalorder %s180, %s182
      %p186 = scmp.eq.s32.totalorder %s33, 0
      %p187 = por %p185, %p186
      %p188 = scmp.ne.s32.totalorder %s180, %s182
      %p189 = scmp.eq.s32.totalorder %s38, 1
      %p190 = por %p188, %p189
      %p191 = scmp.ne.s32.totalorder %s182, %s183
      %p192 = scmp.eq.s32.totalorder %s38, 0
      %p193 = por %p191, %p192
      %p194 = scmp.ne.s32.totalorder %s182, %s183
      %p195 = scmp.eq.s32.totalorder %s39, 1
      %p196 = por %p194, %p195
      %p198 = scmp.ne.s32.totalorder %s183, %s197
      %p199 = scmp.eq.s32.totalorder %s39, 0
      %p200 = por %p198, %p199
      %s202 = sadd.s32 %s201, 1
      %p205 = scmp.eq.s32.totalorder %s33, 1
      %p206 = scmp.ne.s32.totalorder %s201, %s203
      %p207 = scmp.eq.s32.totalorder %s33, 0
      %p208 = por %p206, %p207
      %p209 = scmp.ne.s32.totalorder %s201, %s203
      %p210 = scmp.eq.s32.totalorder %s38, 1
      %p211 = por %p209, %p210
      %p212 = scmp.ne.s32.totalorder %s203, %s204
      %p213 = scmp.eq.s32.totalorder %s38, 0
      %p214 = por %p212, %p213
      %p215 = scmp.ne.s32.totalorder %s203, %s204
      %p216 = scmp.eq.s32.totalorder %s39, 1
      %p217 = por %p215, %p216
      %p219 = scmp.ne.s32.totalorder %s204, %s218
      %p220 = scmp.eq.s32.totalorder %s39, 0
      %p221 = por %p219, %p220
      %s223 = sadd.s32 %s222, 1
      %p226 = scmp.eq.s32.totalorder %s33, 1
      %p227 = scmp.ne.s32.totalorder %s222, %s224
      %p228 = scmp.eq.s32.totalorder %s33, 0
      %p229 = por %p227, %p228
      %p230 = scmp.ne.s32.totalorder %s222, %s224
      %p231 = scmp.eq.s32.totalorder %s38, 1
      %p232 = por %p230, %p231
      %p233 = scmp.ne.s32.totalorder %s224, %s225
      %p234 = scmp.eq.s32.totalorder %s38, 0
      %p235 = por %p233, %p234
      %p236 = scmp.ne.s32.totalorder %s224, %s225
      %p237 = scmp.eq.s32.totalorder %s39, 1
      %p238 = por %p236, %p237
      %p240 = scmp.ne.s32.totalorder %s225, %s239
      %p241 = scmp.eq.s32.totalorder %s39, 0
      %p242 = por %p240, %p241
      %s244 = sadd.s32 %s243, 1
      %p247 = scmp.eq.s32.totalorder %s33, 1
      %p248 = scmp.ne.s32.totalorder %s243, %s245
      %p249 = scmp.eq.s32.totalorder %s33, 0
      %p250 = por %p248, %p249
      %p251 = scmp.ne.s32.totalorder %s243, %s245
      %p252 = scmp.eq.s32.totalorder %s38, 1
      %p253 = por %p251, %p252
      %p254 = scmp.ne.s32.totalorder %s245, %s246
      %p255 = scmp.eq.s32.totalorder %s38, 0
      %p256 = por %p254, %p255
      %p257 = scmp.ne.s32.totalorder %s245, %s246
      %p258 = scmp.eq.s32.totalorder %s39, 1
      %p259 = por %p257, %p258
      %p261 = scmp.ne.s32.totalorder %s246, %s260
      %p262 = scmp.eq.s32.totalorder %s39, 0
      %p263 = por %p261, %p262
      %s265 = sadd.s32 %s264, 1
      %p268 = scmp.eq.s32.totalorder %s33, 1
      %p269 = scmp.ne.s32.totalorder %s264, %s266
      %p270 = scmp.eq.s32.totalorder %s33, 0
      %p271 = por %p269, %p270
      %p272 = scmp.ne.s32.totalorder %s264, %s266
      %p273 = scmp.eq.s32.totalorder %s38, 1
      %p274 = por %p272, %p273
      %p275 = scmp.ne.s32.totalorder %s266, %s267
      %p276 = scmp.eq.s32.totalorder %s38, 0
      %p277 = por %p275, %p276
      %p278 = scmp.ne.s32.totalorder %s266, %s267
      %p279 = scmp.eq.s32.totalorder %s39, 1
      %p280 = por %p278, %p279
      %p282 = scmp.ne.s32.totalorder %s267, %s281
      %p283 = scmp.eq.s32.totalorder %s39, 0
      %p284 = por %p282, %p283
      %s286 = sadd.s32 %s285, 1
      %p289 = scmp.eq.s32.totalorder %s33, 1
      %p290 = scmp.ne.s32.totalorder %s285, %s287
      %p291 = scmp.eq.s32.totalorder %s33, 0
      %p292 = por %p290, %p291
      %p293 = scmp.ne.s32.totalorder %s285, %s287
      %p294 = scmp.eq.s32.totalorder %s38, 1
      %p295 = por %p293, %p294
      %p296 = scmp.ne.s32.totalorder %s287, %s288
      %p297 = scmp.eq.s32.totalorder %s38, 0
      %p298 = por %p296, %p297
      %p299 = scmp.ne.s32.totalorder %s287, %s288
      %p300 = scmp.eq.s32.totalorder %s39, 1
      %p301 = por %p299, %p300
      %p303 = scmp.ne.s32.totalorder %s288, %s302
      %p304 = scmp.eq.s32.totalorder %s39, 0
      %p305 = por %p303, %p304
      %s307 = sadd.s32 %s306, 1
      %p310 = scmp.eq.s32.totalorder %s33, 1
      %p311 = scmp.ne.s32.totalorder %s306, %s308
      %p312 = scmp.eq.s32.totalorder %s33, 0
      %p313 = por %p311, %p312
      %p314 = scmp.ne.s32.totalorder %s306, %s308
      %p315 = scmp.eq.s32.totalorder %s38, 1
      %p316 = por %p314, %p315
      %p317 = scmp.ne.s32.totalorder %s308, %s309
      %p318 = scmp.eq.s32.totalorder %s38, 0
      %p319 = por %p317, %p318
      %p320 = scmp.ne.s32.totalorder %s308, %s309
      %p321 = scmp.eq.s32.totalorder %s39, 1
      %p322 = por %p320, %p321
      %p324 = scmp.ne.s32.totalorder %s309, %s323
      %p325 = scmp.eq.s32.totalorder %s39, 0
      %p326 = por %p324, %p325
      %s328 = sadd.s32 %s327, 1
      %p331 = scmp.eq.s32.totalorder %s33, 1
      %p332 = scmp.ne.s32.totalorder %s327, %s329
      %p333 = scmp.eq.s32.totalorder %s33, 0
      %p334 = por %p332, %p333
      %p335 = scmp.ne.s32.totalorder %s327, %s329
      %p336 = scmp.eq.s32.totalorder %s38, 1
      %p337 = por %p335, %p336
      %p338 = scmp.ne.s32.totalorder %s329, %s330
      %p339 = scmp.eq.s32.totalorder %s38, 0
      %p340 = por %p338, %p339
      %p341 = scmp.ne.s32.totalorder %s329, %s330
      %p342 = scmp.eq.s32.totalorder %s39, 1
      %p343 = por %p341, %p342
      %p345 = scmp.ne.s32.totalorder %s330, %s344
      %p346 = scmp.eq.s32.totalorder %s39, 0
      %p347 = por %p345, %p346
      %s349 = sadd.s32 %s348, 1
      %p352 = scmp.eq.s32.totalorder %s33, 1
      %p353 = scmp.ne.s32.totalorder %s348, %s350
      %p354 = scmp.eq.s32.totalorder %s33, 0
      %p355 = por %p353, %p354
      %p356 = scmp.ne.s32.totalorder %s348, %s350
      %p357 = scmp.eq.s32.totalorder %s38, 1
      %p358 = por %p356, %p357
      %p359 = scmp.ne.s32.totalorder %s350, %s351
      %p360 = scmp.eq.s32.totalorder %s38, 0
      %p361 = por %p359, %p360
      %p362 = scmp.ne.s32.totalorder %s350, %s351
      %p363 = scmp.eq.s32.totalorder %s39, 1
      %p364 = por %p362, %p363
      %p366 = scmp.ne.s32.totalorder %s351, %s365
      %p367 = scmp.eq.s32.totalorder %s39, 0
      %p368 = por %p366, %p367
      %s370 = sadd.s32 %s369, 1
      %p373 = scmp.eq.s32.totalorder %s33, 1
      %p374 = scmp.ne.s32.totalorder %s369, %s371
      %p375 = scmp.eq.s32.totalorder %s33, 0
      %p376 = por %p374, %p375
      %p377 = scmp.ne.s32.totalorder %s369, %s371
      %p378 = scmp.eq.s32.totalorder %s38, 1
      %p379 = por %p377, %p378
      %p380 = scmp.ne.s32.totalorder %s371, %s372
      %p381 = scmp.eq.s32.totalorder %s38, 0
      %p382 = por %p380, %p381
      %p383 = scmp.ne.s32.totalorder %s371, %s372
      %p384 = scmp.eq.s32.totalorder %s39, 1
      %p385 = por %p383, %p384
      %p387 = scmp.ne.s32.totalorder %s372, %s386
      %p388 = scmp.eq.s32.totalorder %s39, 0
      %p389 = por %p387, %p388
      %s390 = ssub.s32 %s40, %s52
      %s391 = ssub.s32 %s41, %s48
      %s392 = sor.u32 %s390, %s391
      %p393 = scmp.eq.s32.totalorder %s392, 0
      %s395 = sadd.s32 %s394, 1
      %s396 = scalar_select %p393, %s394, %s395
      %p399 = pneg %p393
      %p400 = scmp.eq.s32.totalorder %s33, 1
      %p401 = por %p399, %p400
      %p402 = scmp.ne.s32.totalorder %s394, %s397
      %p403 = scmp.eq.s32.totalorder %s33, 0
      %p404 = por %p402, %p403
      %p405 = scmp.ne.s32.totalorder %s394, %s397
      %p406 = scmp.eq.s32.totalorder %s38, 1
      %p407 = por %p405, %p406
      %p408 = scmp.ne.s32.totalorder %s397, %s398
      %p409 = scmp.eq.s32.totalorder %s38, 0
      %p410 = por %p408, %p409
      %p411 = scmp.ne.s32.totalorder %s397, %s398
      %p412 = scmp.eq.s32.totalorder %s39, 1
      %p413 = por %p411, %p412
      %p415 = scmp.ne.s32.totalorder %s398, %s414
      %p416 = scmp.eq.s32.totalorder %s39, 0
      %p417 = por %p415, %p416
      %p418 = scmp.le.s32.totalorder 1, %s33
      %p419 = scmp.lt.s32.totalorder %s33, 3
      %p420 = pnand %p418, %p419
      %p421 = pneg %p420
      // Predicated region
      $region9: #{tpu_custom_call.1} parent=5 // pred_check
        _
      $region10: #{tpu_custom_call.1} parent=5 // pred_check_branch
        %423 = sbr.rel (%p420) target = $region12
      $region11: #{tpu_custom_call.1} parent=5 // pred_region
        %s424 = ssub.s32 %s33, 1
        // Predicated region
        $region13: #{tpu_custom_call.1} parent=11 // pred_check
          %p425 = pneg %p146
        $region14: #{tpu_custom_call.1} parent=11 // pred_check_branch
          %427 = sbr.rel (%p425) target = $region16
        $region15: #{tpu_custom_call.1} parent=11 // pred_region
          _
        $region16: #{tpu_custom_call.1} parent=11 // pred_fallthru
          _
        // Predicated region
        $region17: #{tpu_custom_call.1} parent=11 // pred_check
          %p428 = pneg %p193
        $region18: #{tpu_custom_call.1} parent=11 // pred_check_branch
          %430 = sbr.rel (%p428) target = $region20
        $region19: #{tpu_custom_call.1} parent=11 // pred_region
          _
        $region20: #{tpu_custom_call.1} parent=11 // pred_fallthru
          _
        // Predicated region
        $region21: #{tpu_custom_call.1} parent=11 // pred_check
          %p431 = pneg %p214
        $region22: #{tpu_custom_call.1} parent=11 // pred_check_branch
          %433 = sbr.rel (%p431) target = $region24
        $region23: #{tpu_custom_call.1} parent=11 // pred_region
          _
        $region24: #{tpu_custom_call.1} parent=11 // pred_fallthru
          _
        // Predicated region
        $region25: #{tpu_custom_call.1} parent=11 // pred_check
          %p434 = pneg %p235
        $region26: #{tpu_custom_call.1} parent=11 // pred_check_branch
          %436 = sbr.rel (%p434) target = $region28
        $region27: #{tpu_custom_call.1} parent=11 // pred_region
          _
        $region28: #{tpu_custom_call.1} parent=11 // pred_fallthru
          _
        // Predicated region
        $region29: #{tpu_custom_call.1} parent=11 // pred_check
          %p437 = pneg %p256
        $region30: #{tpu_custom_call.1} parent=11 // pred_check_branch
          %439 = sbr.rel (%p437) target = $region32
        $region31: #{tpu_custom_call.1} parent=11 // pred_region
          _
        $region32: #{tpu_custom_call.1} parent=11 // pred_fallthru
          _
        // Predicated region
        $region33: #{tpu_custom_call.1} parent=11 // pred_check
          %p440 = pneg %p277
        $region34: #{tpu_custom_call.1} parent=11 // pred_check_branch
          %442 = sbr.rel (%p440) target = $region36
        $region35: #{tpu_custom_call.1} parent=11 // pred_region
          _
        $region36: #{tpu_custom_call.1} parent=11 // pred_fallthru
          _
        // Predicated region
        $region37: #{tpu_custom_call.1} parent=11 // pred_check
          %p443 = pneg %p298
        $region38: #{tpu_custom_call.1} parent=11 // pred_check_branch
          %445 = sbr.rel (%p443) target = $region40
        $region39: #{tpu_custom_call.1} parent=11 // pred_region
          _
        $region40: #{tpu_custom_call.1} parent=11 // pred_fallthru
          _
        // Predicated region
        $region41: #{tpu_custom_call.1} parent=11 // pred_check
          %p446 = pneg %p319
        $region42: #{tpu_custom_call.1} parent=11 // pred_check_branch
          %448 = sbr.rel (%p446) target = $region44
        $region43: #{tpu_custom_call.1} parent=11 // pred_region
          %s450 = ssub.s32 512, 512
          %451 = vsyncadd [#allocation9], %s450
          %s452 = sshll.u32 [#allocation10], 4
          %s453 = int_to_ptr.vmem [resolvable:$true] %s452
          %458 = dma.hbm_to_vmem [thread:$0]  %s11, 512, %s453, [#allocation9], 128, 128, 8
        $region44: #{tpu_custom_call.1} parent=11 // pred_fallthru
          _
        // Predicated region
        $region45: #{tpu_custom_call.1} parent=11 // pred_check
          %p459 = pneg %p340
        $region46: #{tpu_custom_call.1} parent=11 // pred_check_branch
          %461 = sbr.rel (%p459) target = $region48
        $region47: #{tpu_custom_call.1} parent=11 // pred_region
          _
        $region48: #{tpu_custom_call.1} parent=11 // pred_fallthru
          _
        // Predicated region
        $region49: #{tpu_custom_call.1} parent=11 // pred_check
          %p462 = pneg %p361
        $region50: #{tpu_custom_call.1} parent=11 // pred_check_branch
          %464 = sbr.rel (%p462) target = $region52
        $region51: #{tpu_custom_call.1} parent=11 // pred_region
          _
        $region52: #{tpu_custom_call.1} parent=11 // pred_fallthru
          _
        // Predicated region
        $region53: #{tpu_custom_call.1} parent=11 // pred_check
          %p465 = pneg %p382
        $region54: #{tpu_custom_call.1} parent=11 // pred_check_branch
          %467 = sbr.rel (%p465) target = $region56
        $region55: #{tpu_custom_call.1} parent=11 // pred_region
          _
        $region56: #{tpu_custom_call.1} parent=11 // pred_fallthru
          _
      $region12: #{tpu_custom_call.1} parent=5 // pred_fallthru
        _
      %p468 = scmp.lt.s32.totalorder %s33, 2
      // Predicated region
      $region57: #{tpu_custom_call.1} parent=5 // pred_check
        %p469 = pneg %p468
      $region58: #{tpu_custom_call.1} parent=5 // pred_check_branch
        %471 = sbr.rel (%p469) target = $region60
      $region59: #{tpu_custom_call.1} parent=5 // pred_region
        // Predicated region
        $region61: #{tpu_custom_call.1} parent=59 // pred_check
          %p472 = pneg %p67
        $region62: #{tpu_custom_call.1} parent=59 // pred_check_branch
          %474 = sbr.rel (%p472) target = $region64
        $region63: #{tpu_custom_call.1} parent=59 // pred_region
          %s475 = sand.u32 %s57, 1
          %s476 = scalar_lea.sflag [#allocation3], %s475
          %s477 = sand.u32 %s57, 1
          %s478 = smul.addr %s477, 8
          %s479 = scalar_lea.vmem [#allocation2], %s478
          %s481 = ssub.s32 128, 128
          %482 = vsyncadd %s476, %s481
          %s483 = sadd.s32 %s41, %s40
          %s484 = smul.addr %s483, 128
          %s485 = scalar_lea.hbm %s0, %s484
          %s487 = sshll.u32 %s479, 4
          %s488 = int_to_ptr.vmem [resolvable:$true] %s487
          %490 = dma.hbm_to_vmem [thread:$0]  %s485, 128, %s488, %s476
        $region64: #{tpu_custom_call.1} parent=59 // pred_fallthru
          _
        // Predicated region
        $region65: #{tpu_custom_call.1} parent=59 // pred_check
          %p491 = pneg %p93
        $region66: #{tpu_custom_call.1} parent=59 // pred_check_branch
          %493 = sbr.rel (%p491) target = $region68
        $region67: #{tpu_custom_call.1} parent=59 // pred_region
          %s494 = sand.u32 %s33, 1
          %s495 = scalar_lea.sflag [#allocation6], %s494
          %s496 = sand.u32 %s83, 1
          %s497 = smul.addr %s496, 8
          %s498 = scalar_lea.vmem [#allocation5], %s497
          %s500 = ssub.s32 128, 128
          %501 = vsyncadd %s495, %s500
          %s502 = smul.addr %s40, 128
          %s503 = scalar_lea.hbm %s1, %s502
          %s505 = sshll.u32 %s498, 4
          %s506 = int_to_ptr.vmem [resolvable:$true] %s505
          %508 = dma.hbm_to_vmem [thread:$0]  %s503, 128, %s506, %s495
        $region68: #{tpu_custom_call.1} parent=59 // pred_fallthru
          _
        // Predicated region
        $region69: #{tpu_custom_call.1} parent=59 // pred_check
          %p509 = pneg %p119
        $region70: #{tpu_custom_call.1} parent=59 // pred_check_branch
          %511 = sbr.rel (%p509) target = $region72
        $region71: #{tpu_custom_call.1} parent=59 // pred_region
          %s512 = sand.u32 %s33, 1
          %s513 = scalar_lea.sflag [#allocation6], %s512
          %s514 = sand.u32 %s109, 1
          %s515 = smul.addr %s514, 8
          %s516 = scalar_lea.vmem [#allocation7], %s515
          %s518 = ssub.s32 128, 128
          %519 = vsyncadd %s513, %s518
          %s520 = smul.addr %s40, 128
          %s521 = scalar_lea.hbm %s2, %s520
          %s523 = sshll.u32 %s516, 4
          %s524 = int_to_ptr.vmem [resolvable:$true] %s523
          %526 = dma.hbm_to_vmem [thread:$0]  %s521, 128, %s524, %s513
        $region72: #{tpu_custom_call.1} parent=59 // pred_fallthru
          _
        // Predicated region
        $region73: #{tpu_custom_call.1} parent=59 // pred_check
          %p527 = pneg %p166
        $region74: #{tpu_custom_call.1} parent=59 // pred_check_branch
          %529 = sbr.rel (%p527) target = $region76
        $region75: #{tpu_custom_call.1} parent=59 // pred_region
          %s530 = sand.u32 %s33, 1
          %s531 = scalar_lea.sflag [#allocation9], %s530
          %s532 = sand.u32 %s156, 1
          %s533 = scalar_lea.vmem [#allocation8], %s532
          %s535 = ssub.s32 16, 16
          %536 = vsyncadd %s531, %s535
          %s537 = smul.addr %s40, 16
          %s538 = scalar_lea.hbm %s4, %s537
          %s540 = sshll.u32 %s533, 4
          %s541 = int_to_ptr.vmem [resolvable:$true] %s540
          %543 = dma.hbm_to_vmem [thread:$0]  %s538, 16, %s541, %s531
        $region76: #{tpu_custom_call.1} parent=59 // pred_fallthru
          _
      $region60: #{tpu_custom_call.1} parent=5 // pred_fallthru
        _
      %p544 = scmp.le.s32.totalorder 1, %s33
      %p545 = scmp.lt.s32.totalorder %s33, 3
      %p546 = pnand %p544, %p545
      %p547 = pneg %p546
      // Predicated region
      $region77: #{tpu_custom_call.1} parent=5 // pred_check
        _
      $region78: #{tpu_custom_call.1} parent=5 // pred_check_branch
        %549 = sbr.rel (%p546) target = $region80
      $region79: #{tpu_custom_call.1} parent=5 // pred_region
        %s550 = ssub.s32 %s33, 1
        %s551 = sand.u32 %s60, 1
        %s552 = scalar_lea.sflag [#allocation3], %s551
        %s553 = sand.u32 %s60, 1
        %s554 = smul.addr %s553, 8
        %s555 = scalar_lea.vmem [#allocation2], %s554
        // Predicated region
        $region81: #{tpu_custom_call.1} parent=79 // pred_check
          %p556 = pneg %p73
        $region82: #{tpu_custom_call.1} parent=79 // pred_check_branch
          %558 = sbr.rel (%p556) target = $region84
        $region83: #{tpu_custom_call.1} parent=79 // pred_region
          %559 = dma.done %s552, 128
        $region84: #{tpu_custom_call.1} parent=79 // pred_fallthru
          _
        %s560 = sand.u32 %s38, 1
        %s561 = scalar_lea.sflag [#allocation6], %s560
        %s562 = sand.u32 %s86, 1
        %s563 = smul.addr %s562, 8
        %s564 = scalar_lea.vmem [#allocation5], %s563
        // Predicated region
        $region85: #{tpu_custom_call.1} parent=79 // pred_check
          %p565 = pneg %p99
        $region86: #{tpu_custom_call.1} parent=79 // pred_check_branch
          %567 = sbr.rel (%p565) target = $region88
        $region87: #{tpu_custom_call.1} parent=79 // pred_region
          %568 = dma.done %s561, 128
        $region88: #{tpu_custom_call.1} parent=79 // pred_fallthru
          _
        %s569 = sand.u32 %s38, 1
        %s570 = scalar_lea.sflag [#allocation6], %s569
        %s571 = sand.u32 %s112, 1
        %s572 = smul.addr %s571, 8
        %s573 = scalar_lea.vmem [#allocation7], %s572
        // Predicated region
        $region89: #{tpu_custom_call.1} parent=79 // pred_check
          %p574 = pneg %p125
        $region90: #{tpu_custom_call.1} parent=79 // pred_check_branch
          %576 = sbr.rel (%p574) target = $region92
        $region91: #{tpu_custom_call.1} parent=79 // pred_region
          %577 = dma.done %s570, 128
        $region92: #{tpu_custom_call.1} parent=79 // pred_fallthru
          _
        %s578 = sand.u32 %s38, 1
        %s579 = scalar_lea.sflag [#allocation9], %s578
        %s580 = sand.u32 %s159, 1
        %s581 = scalar_lea.vmem [#allocation8], %s580
        // Predicated region
        $region93: #{tpu_custom_call.1} parent=79 // pred_check
          %p582 = pneg %p172
        $region94: #{tpu_custom_call.1} parent=79 // pred_check_branch
          %584 = sbr.rel (%p582) target = $region96
        $region95: #{tpu_custom_call.1} parent=79 // pred_region
          %585 = dma.done %s579, 16
        $region96: #{tpu_custom_call.1} parent=79 // pred_fallthru
          _
        // Predicated region
        $region97: #{tpu_custom_call.1} parent=79 // pred_check
          %p586 = pneg %p319
        $region98: #{tpu_custom_call.1} parent=79 // pred_check_branch
          %588 = sbr.rel (%p586) target = $region100
        $region99: #{tpu_custom_call.1} parent=79 // pred_region
          %589 = dma.done [#allocation9], 512
        $region100: #{tpu_custom_call.1} parent=79 // pred_fallthru
          _
        %s590 = sand.u32 %s60, 1
        %s591 = scalar_lea.sflag [#allocation3], %s590
        %s592 = sand.u32 %s60, 1
        %s593 = smul.addr %s592, 8
        %s594 = scalar_lea.vmem [#allocation2], %s593
        %p595 = pneg %p73
        %p596 = pneg %p70
        %s597 = sand.u32 %s38, 1
        %s598 = scalar_lea.sflag [#allocation6], %s597
        %s599 = sand.u32 %s86, 1
        %s600 = smul.addr %s599, 8
        %s601 = scalar_lea.vmem [#allocation5], %s600
        %p602 = pneg %p99
        %p603 = pneg %p96
        %s604 = sand.u32 %s38, 1
        %s605 = scalar_lea.sflag [#allocation6], %s604
        %s606 = sand.u32 %s112, 1
        %s607 = smul.addr %s606, 8
        %s608 = scalar_lea.vmem [#allocation7], %s607
        %p609 = pneg %p125
        %p610 = pneg %p122
        %p611 = pneg %p146
        %p612 = pneg %p143
        %s613 = sand.u32 %s38, 1
        %s614 = scalar_lea.sflag [#allocation9], %s613
        %s615 = sand.u32 %s159, 1
        %s616 = scalar_lea.vmem [#allocation8], %s615
        %p617 = pneg %p172
        %p618 = pneg %p169
        %p619 = pneg %p193
        %p620 = pneg %p190
        %p621 = pneg %p214
        %p622 = pneg %p211
        %p623 = pneg %p235
        %p624 = pneg %p232
        %p625 = pneg %p256
        %p626 = pneg %p253
        %p627 = pneg %p277
        %p628 = pneg %p274
        %p629 = pneg %p298
        %p630 = pneg %p295
        %p631 = pneg %p319
        %p632 = pneg %p316
        %p633 = pneg %p340
        %p634 = pneg %p337
        %p635 = pneg %p361
        %p636 = pneg %p358
        %p637 = pneg %p382
        %p638 = pneg %p379
        %p639 = pneg %p410
        %p640 = pneg %p407
        %s641 = sand.u32 %s397, 1
        %s642 = scalar_lea.sflag [#allocation4], %s641
        %s643 = sand.u32 %s397, 1
        %s644 = smul.addr %s643, 8
        %s645 = scalar_lea.vmem [#allocation11], %s644
        %s646 = smul.u32 %s43, 8
        %v647 = vld [vmem:[%s555] sm:$0xff]
        %v648 = vld [vmem:[%s564] sm:$0xff]
        %v649 = vld [vmem:[%s573] sm:$0xff]
        %v650 = vld [vmem:[%s581] sm:$0x1]
        %vm651 = vcmp.gt.f32.partialorder %v650, 0.5
        %v652 = vld [vmem:[%s5] sm:$0xff]
        %v653 = vld [vmem:[%s5 + $0x8] sm:$0xff]
        %v654 = vld [vmem:[%s5 + $0x10] sm:$0xff]
        %v655 = vld [vmem:[%s5 + $0x18] sm:$0xff]
        %v656 = vld [vmem:[%s6] sm:$0x1]
        %v658 = vlaneseq
        %v659 = vshrl.u32 %v658, 7
        %v660 = vsub.s32 0, %v659
        %v661 = vrot.slane %v656, %v660
        %vm663 = vcmask 261120
        %v665 = vsel %vm663, %v647, 0
        %667 = vmatprep.subr.mxu0 0.0
        %668 = vmatpush1.msra.mxu0 0.0
        %669 = vmatprep.subr.mxu0 0.0
        %670 = vmatpush1.msra.mxu0 0.0
        %671 = vmatprep.subr.mxu0 0.0
        %672 = vmatpush1.msra.mxu0 0.0
        %673 = vmatprep.subr.mxu0 0.0
        %674 = vmatpush1.msra.mxu0 0.0
        %675 = vmatprep.subr.mxu0 0.0
        %676 = vmatpush1.msra.mxu0 0.0
        %677 = vmatprep.subr.mxu0 0.0
        %678 = vmatpush1.msra.mxu0 0.0
        %679 = vmatprep.subr.mxu0 0.0
        %680 = vmatpush1.msra.mxu0 0.0
        %681 = vmatprep.subr.mxu0 0.0
        %682 = vmatpush1.msra.mxu0 0.0
        %683 = vmatprep.subr.mxu0 0.0
        %684 = vmatpush1.msra.mxu0 0.0
        %685 = vmatprep.subr.mxu0 0.0
        %686 = vmatpush1.msra.mxu0 0.0
        %687 = vmatprep.subr.mxu0 0.0
        %688 = vmatpush1.msra.mxu0 0.0
        %689 = vmatprep.subr.mxu0 0.0
        %690 = vmatpush1.msra.mxu0 0.0
        %691 = vmatprep.subr.mxu0 0.0
        %692 = vmatpush1.msra.mxu0 %v655
        %693 = vmatprep.subr.mxu0 0.0
        %694 = vmatpush1.msra.mxu0 %v654
        %695 = vmatprep.subr.mxu0 0.0
        %696 = vmatpush1.msra.mxu0 %v653
        %697 = vmatprep.subr.mxu0 0.0
        %698 = vmatpush1.msra.mxu0 %v652
        %699 = vmatprep.subr.mxu0 0.0
        %700 = vmatpush2.msra.mxu0 0.0
        %701 = vmatprep.subr.mxu0 0.0
        %702 = vmatpush2.msra.mxu0 0.0
        %703 = vmatprep.subr.mxu0 0.0
        %704 = vmatpush2.msra.mxu0 0.0
        %705 = vmatprep.subr.mxu0 0.0
        %706 = vmatpush2.msra.mxu0 0.0
        %707 = vmatprep.subr.mxu0 0.0
        %708 = vmatpush2.msra.mxu0 0.0
        %709 = vmatprep.subr.mxu0 0.0
        %710 = vmatpush2.msra.mxu0 0.0
        %711 = vmatprep.subr.mxu0 0.0
        %712 = vmatpush2.msra.mxu0 0.0
        %713 = vmatprep.subr.mxu0 0.0
        %714 = vmatpush2.msra.mxu0 0.0
        %715 = vmatprep.subr.mxu0 0.0
        %716 = vmatpush2.msra.mxu0 0.0
        %717 = vmatprep.subr.mxu0 0.0
        %718 = vmatpush2.msra.mxu0 0.0
        %719 = vmatprep.subr.mxu0 0.0
        %720 = vmatpush2.msra.mxu0 0.0
        %721 = vmatprep.subr.mxu0 0.0
        %722 = vmatpush2.msra.mxu0 0.0
        %723 = vmatprep.subr.mxu0 0.0
        %724 = vmatpush2.msra.mxu0 0.0
        %725 = vmatprep.subr.mxu0 0.0
        %726 = vmatpush2.msra.mxu0 0.0
        %727 = vmatprep.subr.mxu0 0.0
        %728 = vmatpush2.msra.mxu0 0.0
        %729 = vmatprep.subr.mxu0 0.0
        %730 = vmatpush2.msra.mxu0 0.0
        %731 = vmatprep.mubr.f32.mxu0 0.0
        %732 = vmatmul.mubr.f32.gmra.mxu0 %v665
        %v733 = vpop.f32.mrf.mxu0
        %v734 = vadd.f32 %v661, %v733
        %v735 = vpop.f32.mrf.mxu0
        %736 = vdwg.mxu0
        %v737 = vld [vmem:[%s7] sm:$0xff]
        %v738 = vld [vmem:[%s7 + $0x8] sm:$0xff]
        %v739 = vld [vmem:[%s7 + $0x10] sm:$0xff]
        %v740 = vld [vmem:[%s7 + $0x18] sm:$0xff]
        %v741 = vld [vmem:[%s8] sm:$0x1]
        %v743 = vlaneseq
        %v744 = vshrl.u32 %v743, 7
        %v745 = vsub.s32 0, %v744
        %v746 = vrot.slane %v741, %v745
        %v749 = vsel %vm663, %v648, 0
        %751 = vmatprep.subr.mxu0 0.0
        %752 = vmatpush1.msra.mxu0 0.0
        %753 = vmatprep.subr.mxu0 0.0
        %754 = vmatpush1.msra.mxu0 0.0
        %755 = vmatprep.subr.mxu0 0.0
        %756 = vmatpush1.msra.mxu0 0.0
        %757 = vmatprep.subr.mxu0 0.0
        %758 = vmatpush1.msra.mxu0 0.0
        %759 = vmatprep.subr.mxu0 0.0
        %760 = vmatpush1.msra.mxu0 0.0
        %761 = vmatprep.subr.mxu0 0.0
        %762 = vmatpush1.msra.mxu0 0.0
        %763 = vmatprep.subr.mxu0 0.0
        %764 = vmatpush1.msra.mxu0 0.0
        %765 = vmatprep.subr.mxu0 0.0
        %766 = vmatpush1.msra.mxu0 0.0
        %767 = vmatprep.subr.mxu0 0.0
        %768 = vmatpush1.msra.mxu0 0.0
        %769 = vmatprep.subr.mxu0 0.0
        %770 = vmatpush1.msra.mxu0 0.0
        %771 = vmatprep.subr.mxu0 0.0
        %772 = vmatpush1.msra.mxu0 0.0
        %773 = vmatprep.subr.mxu0 0.0
        %774 = vmatpush1.msra.mxu0 0.0
        %775 = vmatprep.subr.mxu0 0.0
        %776 = vmatpush1.msra.mxu0 %v740
        %777 = vmatprep.subr.mxu0 0.0
        %778 = vmatpush1.msra.mxu0 %v739
        %779 = vmatprep.subr.mxu0 0.0
        %780 = vmatpush1.msra.mxu0 %v738
        %781 = vmatprep.subr.mxu0 0.0
        %782 = vmatpush1.msra.mxu0 %v737
        %783 = vmatprep.subr.mxu0 0.0
        %784 = vmatpush2.msra.mxu0 0.0
        %785 = vmatprep.subr.mxu0 0.0
        %786 = vmatpush2.msra.mxu0 0.0
        %787 = vmatprep.subr.mxu0 0.0
        %788 = vmatpush2.msra.mxu0 0.0
        %789 = vmatprep.subr.mxu0 0.0
        %790 = vmatpush2.msra.mxu0 0.0
        %791 = vmatprep.subr.mxu0 0.0
        %792 = vmatpush2.msra.mxu0 0.0
        %793 = vmatprep.subr.mxu0 0.0
        %794 = vmatpush2.msra.mxu0 0.0
        %795 = vmatprep.subr.mxu0 0.0
        %796 = vmatpush2.msra.mxu0 0.0
        %797 = vmatprep.subr.mxu0 0.0
        %798 = vmatpush2.msra.mxu0 0.0
        %799 = vmatprep.subr.mxu0 0.0
        %800 = vmatpush2.msra.mxu0 0.0
        %801 = vmatprep.subr.mxu0 0.0
        %802 = vmatpush2.msra.mxu0 0.0
        %803 = vmatprep.subr.mxu0 0.0
        %804 = vmatpush2.msra.mxu0 0.0
        %805 = vmatprep.subr.mxu0 0.0
        %806 = vmatpush2.msra.mxu0 0.0
        %807 = vmatprep.subr.mxu0 0.0
        %808 = vmatpush2.msra.mxu0 0.0
        %809 = vmatprep.subr.mxu0 0.0
        %810 = vmatpush2.msra.mxu0 0.0
        %811 = vmatprep.subr.mxu0 0.0
        %812 = vmatpush2.msra.mxu0 0.0
        %813 = vmatprep.subr.mxu0 0.0
        %814 = vmatpush2.msra.mxu0 0.0
        %815 = vmatprep.mubr.f32.mxu0 0.0
        %816 = vmatmul.mubr.f32.gmra.mxu0 %v749
        %v817 = vpop.f32.mrf.mxu0
        %v818 = vadd.f32 %v746, %v817
        %v819 = vpop.f32.mrf.mxu0
        %820 = vdwg.mxu0
        %v821 = vld [vmem:[%s9] sm:$0xff]
        %v822 = vld [vmem:[%s9 + $0x8] sm:$0xff]
        %v823 = vld [vmem:[%s9 + $0x10] sm:$0xff]
        %v824 = vld [vmem:[%s9 + $0x18] sm:$0xff]
        %v825 = vld [vmem:[%s10] sm:$0x1]
        %v827 = vlaneseq
        %v828 = vshrl.u32 %v827, 7
        %v829 = vsub.s32 0, %v828
        %v830 = vrot.slane %v825, %v829
        %v833 = vsel %vm663, %v649, 0
        %835 = vmatprep.subr.mxu0 0.0
        %836 = vmatpush1.msra.mxu0 0.0
        %837 = vmatprep.subr.mxu0 0.0
        %838 = vmatpush1.msra.mxu0 0.0
        %839 = vmatprep.subr.mxu0 0.0
        %840 = vmatpush1.msra.mxu0 0.0
        %841 = vmatprep.subr.mxu0 0.0
        %842 = vmatpush1.msra.mxu0 0.0
        %843 = vmatprep.subr.mxu0 0.0
        %844 = vmatpush1.msra.mxu0 0.0
        %845 = vmatprep.subr.mxu0 0.0
        %846 = vmatpush1.msra.mxu0 0.0
        %847 = vmatprep.subr.mxu0 0.0
        %848 = vmatpush1.msra.mxu0 0.0
        %849 = vmatprep.subr.mxu0 0.0
        %850 = vmatpush1.msra.mxu0 0.0
        %851 = vmatprep.subr.mxu0 0.0
        %852 = vmatpush1.msra.mxu0 0.0
        %853 = vmatprep.subr.mxu0 0.0
        %854 = vmatpush1.msra.mxu0 0.0
        %855 = vmatprep.subr.mxu0 0.0
        %856 = vmatpush1.msra.mxu0 0.0
        %857 = vmatprep.subr.mxu0 0.0
        %858 = vmatpush1.msra.mxu0 0.0
        %859 = vmatprep.subr.mxu0 0.0
        %860 = vmatpush1.msra.mxu0 %v824
        %861 = vmatprep.subr.mxu0 0.0
        %862 = vmatpush1.msra.mxu0 %v823
        %863 = vmatprep.subr.mxu0 0.0
        %864 = vmatpush1.msra.mxu0 %v822
        %865 = vmatprep.subr.mxu0 0.0
        %866 = vmatpush1.msra.mxu0 %v821
        %867 = vmatprep.subr.mxu0 0.0
        %868 = vmatpush2.msra.mxu0 0.0
        %869 = vmatprep.subr.mxu0 0.0
        %870 = vmatpush2.msra.mxu0 0.0
        %871 = vmatprep.subr.mxu0 0.0
        %872 = vmatpush2.msra.mxu0 0.0
        %873 = vmatprep.subr.mxu0 0.0
        %874 = vmatpush2.msra.mxu0 0.0
        %875 = vmatprep.subr.mxu0 0.0
        %876 = vmatpush2.msra.mxu0 0.0
        %877 = vmatprep.subr.mxu0 0.0
        %878 = vmatpush2.msra.mxu0 0.0
        %879 = vmatprep.subr.mxu0 0.0
        %880 = vmatpush2.msra.mxu0 0.0
        %881 = vmatprep.subr.mxu0 0.0
        %882 = vmatpush2.msra.mxu0 0.0
        %883 = vmatprep.subr.mxu0 0.0
        %884 = vmatpush2.msra.mxu0 0.0
        %885 = vmatprep.subr.mxu0 0.0
        %886 = vmatpush2.msra.mxu0 0.0
        %887 = vmatprep.subr.mxu0 0.0
        %888 = vmatpush2.msra.mxu0 0.0
        %889 = vmatprep.subr.mxu0 0.0
        %890 = vmatpush2.msra.mxu0 0.0
        %891 = vmatprep.subr.mxu0 0.0
        %892 = vmatpush2.msra.mxu0 0.0
        %893 = vmatprep.subr.mxu0 0.0
        %894 = vmatpush2.msra.mxu0 0.0
        %895 = vmatprep.subr.mxu0 0.0
        %896 = vmatpush2.msra.mxu0 0.0
        %897 = vmatprep.subr.mxu0 0.0
        %898 = vmatpush2.msra.mxu0 0.0
        %899 = vmatprep.mubr.f32.mxu0 0.0
        %900 = vmatmul.mubr.f32.gmra.mxu0 %v833
        %v901 = vpop.f32.mrf.mxu0
        %v902 = vadd.f32 %v830, %v901
        %v903 = vpop.f32.mrf.mxu0
        %904 = vdwg.mxu0
        %906 = vrot.lane.b32.xlu0 %v734, 120
        %v907 = vpop.permute.xlu0 %906
        %909 = vrot.lane.b32.xlu0 %v734, 112
        %v910 = vpop.permute.xlu0 %909
        %912 = vrot.lane.b32.xlu0 %v734, 104
        %v913 = vpop.permute.xlu0 %912
        %916 = vrot.lane.b32.xlu0 %v818, 120
        %v917 = vpop.permute.xlu0 %916
        %918 = vrot.lane.b32.xlu0 %v818, 112
        %v919 = vpop.permute.xlu0 %918
        %920 = vrot.lane.b32.xlu0 %v818, 104
        %v921 = vpop.permute.xlu0 %920
        %923 = vrot.lane.b32.xlu0 %v902, 120
        %v924 = vpop.permute.xlu0 %923
        %926 = vrot.lane.b32.xlu0 %v902, 112
        %v927 = vpop.permute.xlu0 %926
        %929 = vrot.lane.b32.xlu0 %v902, 104
        %v930 = vpop.permute.xlu0 %929
        %v932 = vld [vmem:[%s3] sm:$0xff]
        %v933 = vld [vmem:[%s3 + $0x8] sm:$0x7f]
        %v934 = vld [vmem:[%s3 + $0x10] sm:$0xff]
        %v935 = vld [vmem:[%s3 + $0x18] sm:$0x7f]
        %v936 = vld [vmem:[%s3 + $0x20] sm:$0xff]
        %v937 = vld [vmem:[%s3 + $0x28] sm:$0x7f]
        %v938 = vld [vmem:[%s3 + $0x30] sm:$0xff]
        %v939 = vld [vmem:[%s3 + $0x38] sm:$0x7f]
        %v940 = vld [vmem:[%s13] sm:$0xf]
        %v943 = vunpack.c.l.s4 1966171168
        %v944 = vunpack.c.0.s8 %v943
        %v945 = vlaneseq
        %v946 = vshrl.u32 %v945, 7
        %v947 = vsub.s32 %v944, %v946
        %v948 = vrot.slane %v940, %v947
        %v949 = vcombine.high %v948, %v948
        %v951 = vunpack.c.l.s4 1966171168
        %v952 = vunpack.c.0.s8 %v951
        %v953 = vlaneseq
        %v954 = vshrl.u32 %v953, 7
        %v955 = vsub.s32 %v952, %v954
        %v956 = vrot.slane %v948, %v955
        %v958 = vunpack.c.l.s4 1966171168
        %v959 = vunpack.c.0.s8 %v958
        %v960 = vlaneseq
        %v961 = vshrl.u32 %v960, 7
        %v962 = vsub.s32 %v959, %v961
        %v963 = vrot.slane %v949, %v962
        %v964 = vcombine.high %v956, %v956
        %v965 = vcombine.high %v963, %v963
        %v966 = vlaneseq
        %v967 = vshrl.u32 %v966, 7
        %v968 = vsub.s32 0, %v967
        %v969 = vrot.slane %v956, %v968
        %v970 = vlaneseq
        %v971 = vshrl.u32 %v970, 7
        %v972 = vsub.s32 0, %v971
        %v973 = vrot.slane %v963, %v972
        %v974 = vlaneseq
        %v975 = vshrl.u32 %v974, 7
        %v976 = vsub.s32 0, %v975
        %v977 = vrot.slane %v964, %v976
        %v978 = vlaneseq
        %v979 = vshrl.u32 %v978, 7
        %v980 = vsub.s32 0, %v979
        %v981 = vrot.slane %v965, %v980
        %v986 = vadd.f32 %v734, %v969
        %v987 = vadd.f32 %v907, %v973
        %v988 = vadd.f32 %v910, %v977
        %v989 = vadd.f32 %v913, %v981
        %v990 = vld [vmem:[%s14] sm:$0xf]
        %v993 = vunpack.c.l.s4 1966171168
        %v994 = vunpack.c.0.s8 %v993
        %v995 = vlaneseq
        %v996 = vshrl.u32 %v995, 7
        %v997 = vsub.s32 %v994, %v996
        %v998 = vrot.slane %v990, %v997
        %v999 = vcombine.high %v998, %v998
        %v1001 = vunpack.c.l.s4 1966171168
        %v1002 = vunpack.c.0.s8 %v1001
        %v1003 = vlaneseq
        %v1004 = vshrl.u32 %v1003, 7
        %v1005 = vsub.s32 %v1002, %v1004
        %v1006 = vrot.slane %v998, %v1005
        %v1008 = vunpack.c.l.s4 1966171168
        %v1009 = vunpack.c.0.s8 %v1008
        %v1010 = vlaneseq
        %v1011 = vshrl.u32 %v1010, 7
        %v1012 = vsub.s32 %v1009, %v1011
        %v1013 = vrot.slane %v999, %v1012
        %v1014 = vcombine.high %v1006, %v1006
        %v1015 = vcombine.high %v1013, %v1013
        %v1016 = vlaneseq
        %v1017 = vshrl.u32 %v1016, 7
        %v1018 = vsub.s32 0, %v1017
        %v1019 = vrot.slane %v1006, %v1018
        %v1020 = vlaneseq
        %v1021 = vshrl.u32 %v1020, 7
        %v1022 = vsub.s32 0, %v1021
        %v1023 = vrot.slane %v1013, %v1022
        %v1024 = vlaneseq
        %v1025 = vshrl.u32 %v1024, 7
        %v1026 = vsub.s32 0, %v1025
        %v1027 = vrot.slane %v1014, %v1026
        %v1028 = vlaneseq
        %v1029 = vshrl.u32 %v1028, 7
        %v1030 = vsub.s32 0, %v1029
        %v1031 = vrot.slane %v1015, %v1030
        %v1036 = vadd.f32 %v734, %v1019
        %v1037 = vadd.f32 %v907, %v1023
        %v1038 = vadd.f32 %v910, %v1027
        %v1039 = vadd.f32 %v913, %v1031
        %vm1040 = vcmask 64512
        %v1042 = vsel %vm1040, %v1036, 0
        %v1045 = vsel %vm1040, %v932, 0
        %v1048 = vsel %vm1040, %v933, 0
        %1050 = vmatprep.subr.mxu0 0.0
        %1051 = vmatpush1.xpose.msra.mxu0 0.0
        %1052 = vmatprep.subr.mxu0 0.0
        %1053 = vmatpush1.xpose.msra.mxu0 0.0
        %1054 = vmatprep.subr.mxu0 0.0
        %1055 = vmatpush1.xpose.msra.mxu0 0.0
        %1056 = vmatprep.subr.mxu0 0.0
        %1057 = vmatpush1.xpose.msra.mxu0 0.0
        %1058 = vmatprep.subr.mxu0 0.0
        %1059 = vmatpush1.xpose.msra.mxu0 0.0
        %1060 = vmatprep.subr.mxu0 0.0
        %1061 = vmatpush1.xpose.msra.mxu0 0.0
        %1062 = vmatprep.subr.mxu0 0.0
        %1063 = vmatpush1.xpose.msra.mxu0 0.0
        %1064 = vmatprep.subr.mxu0 0.0
        %1065 = vmatpush1.xpose.msra.mxu0 0.0
        %1066 = vmatprep.subr.mxu0 0.0
        %1067 = vmatpush1.xpose.msra.mxu0 0.0
        %1068 = vmatprep.subr.mxu0 0.0
        %1069 = vmatpush1.xpose.msra.mxu0 0.0
        %1070 = vmatprep.subr.mxu0 0.0
        %1071 = vmatpush1.xpose.msra.mxu0 0.0
        %1072 = vmatprep.subr.mxu0 0.0
        %1073 = vmatpush1.xpose.msra.mxu0 0.0
        %1074 = vmatprep.subr.mxu0 0.0
        %1075 = vmatpush1.xpose.msra.mxu0 0.0
        %1076 = vmatprep.subr.mxu0 0.0
        %1077 = vmatpush1.xpose.msra.mxu0 0.0
        %1078 = vmatprep.subr.mxu0 0.0
        %1079 = vmatpush1.xpose.msra.mxu0 %v1048
        %1080 = vmatprep.subr.mxu0 0.0
        %1081 = vmatpush1.xpose.msra.mxu0 %v1045
        %1082 = vmatprep.subr.mxu0 0.0
        %1083 = vmatpush2.xpose.msra.mxu0 0.0
        %1084 = vmatprep.subr.mxu0 0.0
        %1085 = vmatpush2.xpose.msra.mxu0 0.0
        %1086 = vmatprep.subr.mxu0 0.0
        %1087 = vmatpush2.xpose.msra.mxu0 0.0
        %1088 = vmatprep.subr.mxu0 0.0
        %1089 = vmatpush2.xpose.msra.mxu0 0.0
        %1090 = vmatprep.subr.mxu0 0.0
        %1091 = vmatpush2.xpose.msra.mxu0 0.0
        %1092 = vmatprep.subr.mxu0 0.0
        %1093 = vmatpush2.xpose.msra.mxu0 0.0
        %1094 = vmatprep.subr.mxu0 0.0
        %1095 = vmatpush2.xpose.msra.mxu0 0.0
        %1096 = vmatprep.subr.mxu0 0.0
        %1097 = vmatpush2.xpose.msra.mxu0 0.0
        %1098 = vmatprep.subr.mxu0 0.0
        %1099 = vmatpush2.xpose.msra.mxu0 0.0
        %1100 = vmatprep.subr.mxu0 0.0
        %1101 = vmatpush2.xpose.msra.mxu0 0.0
        %1102 = vmatprep.subr.mxu0 0.0
        %1103 = vmatpush2.xpose.msra.mxu0 0.0
        %1104 = vmatprep.subr.mxu0 0.0
        %1105 = vmatpush2.xpose.msra.mxu0 0.0
        %1106 = vmatprep.subr.mxu0 0.0
        %1107 = vmatpush2.xpose.msra.mxu0 0.0
        %1108 = vmatprep.subr.mxu0 0.0
        %1109 = vmatpush2.xpose.msra.mxu0 0.0
        %1110 = vmatprep.subr.mxu0 0.0
        %1111 = vmatpush2.xpose.msra.mxu0 0.0
        %1112 = vmatprep.subr.mxu0 0.0
        %1113 = vmatpush2.xpose.msra.mxu0 0.0
        %1114 = vmatprep.mubr.f32.mxu0 0.0
        %1115 = vmatmul.mubr.f32.gmra.mxu0 %v1042
        %v1116 = vpop.f32.mrf.mxu0
        %v1117 = vadd.f32 0.0, %v1116
        %v1118 = vpop.f32.mrf.mxu0
        %1119 = vdwg.mxu0
        %v1121 = vsel %vm1040, %v1037, 0
        %v1124 = vsel %vm1040, %v934, 0
        %v1127 = vsel %vm1040, %v935, 0
        %1129 = vmatprep.subr.mxu0 0.0
        %1130 = vmatpush1.xpose.msra.mxu0 0.0
        %1131 = vmatprep.subr.mxu0 0.0
        %1132 = vmatpush1.xpose.msra.mxu0 0.0
        %1133 = vmatprep.subr.mxu0 0.0
        %1134 = vmatpush1.xpose.msra.mxu0 0.0
        %1135 = vmatprep.subr.mxu0 0.0
        %1136 = vmatpush1.xpose.msra.mxu0 0.0
        %1137 = vmatprep.subr.mxu0 0.0
        %1138 = vmatpush1.xpose.msra.mxu0 0.0
        %1139 = vmatprep.subr.mxu0 0.0
        %1140 = vmatpush1.xpose.msra.mxu0 0.0
        %1141 = vmatprep.subr.mxu0 0.0
        %1142 = vmatpush1.xpose.msra.mxu0 0.0
        %1143 = vmatprep.subr.mxu0 0.0
        %1144 = vmatpush1.xpose.msra.mxu0 0.0
        %1145 = vmatprep.subr.mxu0 0.0
        %1146 = vmatpush1.xpose.msra.mxu0 0.0
        %1147 = vmatprep.subr.mxu0 0.0
        %1148 = vmatpush1.xpose.msra.mxu0 0.0
        %1149 = vmatprep.subr.mxu0 0.0
        %1150 = vmatpush1.xpose.msra.mxu0 0.0
        %1151 = vmatprep.subr.mxu0 0.0
        %1152 = vmatpush1.xpose.msra.mxu0 0.0
        %1153 = vmatprep.subr.mxu0 0.0
        %1154 = vmatpush1.xpose.msra.mxu0 0.0
        %1155 = vmatprep.subr.mxu0 0.0
        %1156 = vmatpush1.xpose.msra.mxu0 0.0
        %1157 = vmatprep.subr.mxu0 0.0
        %1158 = vmatpush1.xpose.msra.mxu0 %v1127
        %1159 = vmatprep.subr.mxu0 0.0
        %1160 = vmatpush1.xpose.msra.mxu0 %v1124
        %1161 = vmatprep.subr.mxu0 0.0
        %1162 = vmatpush2.xpose.msra.mxu0 0.0
        %1163 = vmatprep.subr.mxu0 0.0
        %1164 = vmatpush2.xpose.msra.mxu0 0.0
        %1165 = vmatprep.subr.mxu0 0.0
        %1166 = vmatpush2.xpose.msra.mxu0 0.0
        %1167 = vmatprep.subr.mxu0 0.0
        %1168 = vmatpush2.xpose.msra.mxu0 0.0
        %1169 = vmatprep.subr.mxu0 0.0
        %1170 = vmatpush2.xpose.msra.mxu0 0.0
        %1171 = vmatprep.subr.mxu0 0.0
        %1172 = vmatpush2.xpose.msra.mxu0 0.0
        %1173 = vmatprep.subr.mxu0 0.0
        %1174 = vmatpush2.xpose.msra.mxu0 0.0
        %1175 = vmatprep.subr.mxu0 0.0
        %1176 = vmatpush2.xpose.msra.mxu0 0.0
        %1177 = vmatprep.subr.mxu0 0.0
        %1178 = vmatpush2.xpose.msra.mxu0 0.0
        %1179 = vmatprep.subr.mxu0 0.0
        %1180 = vmatpush2.xpose.msra.mxu0 0.0
        %1181 = vmatprep.subr.mxu0 0.0
        %1182 = vmatpush2.xpose.msra.mxu0 0.0
        %1183 = vmatprep.subr.mxu0 0.0
        %1184 = vmatpush2.xpose.msra.mxu0 0.0
        %1185 = vmatprep.subr.mxu0 0.0
        %1186 = vmatpush2.xpose.msra.mxu0 0.0
        %1187 = vmatprep.subr.mxu0 0.0
        %1188 = vmatpush2.xpose.msra.mxu0 0.0
        %1189 = vmatprep.subr.mxu0 0.0
        %1190 = vmatpush2.xpose.msra.mxu0 0.0
        %1191 = vmatprep.subr.mxu0 0.0
        %1192 = vmatpush2.xpose.msra.mxu0 0.0
        %1193 = vmatprep.mubr.f32.mxu0 0.0
        %1194 = vmatmul.mubr.f32.gmra.mxu0 %v1121
        %v1195 = vpop.f32.mrf.mxu0
        %v1196 = vadd.f32 0.0, %v1195
        %v1197 = vpop.f32.mrf.mxu0
        %1198 = vdwg.mxu0
        %v1200 = vsel %vm1040, %v1038, 0
        %v1203 = vsel %vm1040, %v936, 0
        %v1206 = vsel %vm1040, %v937, 0
        %1208 = vmatprep.subr.mxu0 0.0
        %1209 = vmatpush1.xpose.msra.mxu0 0.0
        %1210 = vmatprep.subr.mxu0 0.0
        %1211 = vmatpush1.xpose.msra.mxu0 0.0
        %1212 = vmatprep.subr.mxu0 0.0
        %1213 = vmatpush1.xpose.msra.mxu0 0.0
        %1214 = vmatprep.subr.mxu0 0.0
        %1215 = vmatpush1.xpose.msra.mxu0 0.0
        %1216 = vmatprep.subr.mxu0 0.0
        %1217 = vmatpush1.xpose.msra.mxu0 0.0
        %1218 = vmatprep.subr.mxu0 0.0
        %1219 = vmatpush1.xpose.msra.mxu0 0.0
        %1220 = vmatprep.subr.mxu0 0.0
        %1221 = vmatpush1.xpose.msra.mxu0 0.0
        %1222 = vmatprep.subr.mxu0 0.0
        %1223 = vmatpush1.xpose.msra.mxu0 0.0
        %1224 = vmatprep.subr.mxu0 0.0
        %1225 = vmatpush1.xpose.msra.mxu0 0.0
        %1226 = vmatprep.subr.mxu0 0.0
        %1227 = vmatpush1.xpose.msra.mxu0 0.0
        %1228 = vmatprep.subr.mxu0 0.0
        %1229 = vmatpush1.xpose.msra.mxu0 0.0
        %1230 = vmatprep.subr.mxu0 0.0
        %1231 = vmatpush1.xpose.msra.mxu0 0.0
        %1232 = vmatprep.subr.mxu0 0.0
        %1233 = vmatpush1.xpose.msra.mxu0 0.0
        %1234 = vmatprep.subr.mxu0 0.0
        %1235 = vmatpush1.xpose.msra.mxu0 0.0
        %1236 = vmatprep.subr.mxu0 0.0
        %1237 = vmatpush1.xpose.msra.mxu0 %v1206
        %1238 = vmatprep.subr.mxu0 0.0
        %1239 = vmatpush1.xpose.msra.mxu0 %v1203
        %1240 = vmatprep.subr.mxu0 0.0
        %1241 = vmatpush2.xpose.msra.mxu0 0.0
        %1242 = vmatprep.subr.mxu0 0.0
        %1243 = vmatpush2.xpose.msra.mxu0 0.0
        %1244 = vmatprep.subr.mxu0 0.0
        %1245 = vmatpush2.xpose.msra.mxu0 0.0
        %1246 = vmatprep.subr.mxu0 0.0
        %1247 = vmatpush2.xpose.msra.mxu0 0.0
        %1248 = vmatprep.subr.mxu0 0.0
        %1249 = vmatpush2.xpose.msra.mxu0 0.0
        %1250 = vmatprep.subr.mxu0 0.0
        %1251 = vmatpush2.xpose.msra.mxu0 0.0
        %1252 = vmatprep.subr.mxu0 0.0
        %1253 = vmatpush2.xpose.msra.mxu0 0.0
        %1254 = vmatprep.subr.mxu0 0.0
        %1255 = vmatpush2.xpose.msra.mxu0 0.0
        %1256 = vmatprep.subr.mxu0 0.0
        %1257 = vmatpush2.xpose.msra.mxu0 0.0
        %1258 = vmatprep.subr.mxu0 0.0
        %1259 = vmatpush2.xpose.msra.mxu0 0.0
        %1260 = vmatprep.subr.mxu0 0.0
        %1261 = vmatpush2.xpose.msra.mxu0 0.0
        %1262 = vmatprep.subr.mxu0 0.0
        %1263 = vmatpush2.xpose.msra.mxu0 0.0
        %1264 = vmatprep.subr.mxu0 0.0
        %1265 = vmatpush2.xpose.msra.mxu0 0.0
        %1266 = vmatprep.subr.mxu0 0.0
        %1267 = vmatpush2.xpose.msra.mxu0 0.0
        %1268 = vmatprep.subr.mxu0 0.0
        %1269 = vmatpush2.xpose.msra.mxu0 0.0
        %1270 = vmatprep.subr.mxu0 0.0
        %1271 = vmatpush2.xpose.msra.mxu0 0.0
        %1272 = vmatprep.mubr.f32.mxu0 0.0
        %1273 = vmatmul.mubr.f32.gmra.mxu0 %v1200
        %v1274 = vpop.f32.mrf.mxu0
        %v1275 = vadd.f32 0.0, %v1274
        %v1276 = vpop.f32.mrf.mxu0
        %1277 = vdwg.mxu0
        %v1279 = vsel %vm1040, %v1039, 0
        %v1282 = vsel %vm1040, %v938, 0
        %v1285 = vsel %vm1040, %v939, 0
        %1287 = vmatprep.subr.mxu0 0.0
        %1288 = vmatpush1.xpose.msra.mxu0 0.0
        %1289 = vmatprep.subr.mxu0 0.0
        %1290 = vmatpush1.xpose.msra.mxu0 0.0
        %1291 = vmatprep.subr.mxu0 0.0
        %1292 = vmatpush1.xpose.msra.mxu0 0.0
        %1293 = vmatprep.subr.mxu0 0.0
        %1294 = vmatpush1.xpose.msra.mxu0 0.0
        %1295 = vmatprep.subr.mxu0 0.0
        %1296 = vmatpush1.xpose.msra.mxu0 0.0
        %1297 = vmatprep.subr.mxu0 0.0
        %1298 = vmatpush1.xpose.msra.mxu0 0.0
        %1299 = vmatprep.subr.mxu0 0.0
        %1300 = vmatpush1.xpose.msra.mxu0 0.0
        %1301 = vmatprep.subr.mxu0 0.0
        %1302 = vmatpush1.xpose.msra.mxu0 0.0
        %1303 = vmatprep.subr.mxu0 0.0
        %1304 = vmatpush1.xpose.msra.mxu0 0.0
        %1305 = vmatprep.subr.mxu0 0.0
        %1306 = vmatpush1.xpose.msra.mxu0 0.0
        %1307 = vmatprep.subr.mxu0 0.0
        %1308 = vmatpush1.xpose.msra.mxu0 0.0
        %1309 = vmatprep.subr.mxu0 0.0
        %1310 = vmatpush1.xpose.msra.mxu0 0.0
        %1311 = vmatprep.subr.mxu0 0.0
        %1312 = vmatpush1.xpose.msra.mxu0 0.0
        %1313 = vmatprep.subr.mxu0 0.0
        %1314 = vmatpush1.xpose.msra.mxu0 0.0
        %1315 = vmatprep.subr.mxu0 0.0
        %1316 = vmatpush1.xpose.msra.mxu0 %v1285
        %1317 = vmatprep.subr.mxu0 0.0
        %1318 = vmatpush1.xpose.msra.mxu0 %v1282
        %1319 = vmatprep.subr.mxu0 0.0
        %1320 = vmatpush2.xpose.msra.mxu0 0.0
        %1321 = vmatprep.subr.mxu0 0.0
        %1322 = vmatpush2.xpose.msra.mxu0 0.0
        %1323 = vmatprep.subr.mxu0 0.0
        %1324 = vmatpush2.xpose.msra.mxu0 0.0
        %1325 = vmatprep.subr.mxu0 0.0
        %1326 = vmatpush2.xpose.msra.mxu0 0.0
        %1327 = vmatprep.subr.mxu0 0.0
        %1328 = vmatpush2.xpose.msra.mxu0 0.0
        %1329 = vmatprep.subr.mxu0 0.0
        %1330 = vmatpush2.xpose.msra.mxu0 0.0
        %1331 = vmatprep.subr.mxu0 0.0
        %1332 = vmatpush2.xpose.msra.mxu0 0.0
        %1333 = vmatprep.subr.mxu0 0.0
        %1334 = vmatpush2.xpose.msra.mxu0 0.0
        %1335 = vmatprep.subr.mxu0 0.0
        %1336 = vmatpush2.xpose.msra.mxu0 0.0
        %1337 = vmatprep.subr.mxu0 0.0
        %1338 = vmatpush2.xpose.msra.mxu0 0.0
        %1339 = vmatprep.subr.mxu0 0.0
        %1340 = vmatpush2.xpose.msra.mxu0 0.0
        %1341 = vmatprep.subr.mxu0 0.0
        %1342 = vmatpush2.xpose.msra.mxu0 0.0
        %1343 = vmatprep.subr.mxu0 0.0
        %1344 = vmatpush2.xpose.msra.mxu0 0.0
        %1345 = vmatprep.subr.mxu0 0.0
        %1346 = vmatpush2.xpose.msra.mxu0 0.0
        %1347 = vmatprep.subr.mxu0 0.0
        %1348 = vmatpush2.xpose.msra.mxu0 0.0
        %1349 = vmatprep.subr.mxu0 0.0
        %1350 = vmatpush2.xpose.msra.mxu0 0.0
        %1351 = vmatprep.mubr.f32.mxu0 0.0
        %1352 = vmatmul.mubr.f32.gmra.mxu0 %v1279
        %v1353 = vpop.f32.mrf.mxu0
        %v1354 = vadd.f32 0.0, %v1353
        %v1355 = vpop.f32.mrf.mxu0
        %1356 = vdwg.mxu0
        %v1357 = vlaneseq
        %v1358 = vshrl.u32 %v1357, 7
        %v1359 = vstv %s646
        %v1360 = vadd.s32 %v1358, %v1359
        %v1361 = vsub.s32 7, %v1360
        %1366 = vrot.lane.b32.xlu0 %v1117, 127
        %v1367 = vpop.permute.xlu0 %1366
        %1368 = vrot.lane.b32.xlu0 %v1196, 127
        %v1369 = vpop.permute.xlu0 %1368
        %1370 = vrot.lane.b32.xlu0 %v1275, 127
        %v1371 = vpop.permute.xlu0 %1370
        %1372 = vrot.lane.b32.xlu0 %v1354, 127
        %v1373 = vpop.permute.xlu0 %1372
        %1378 = vrot.lane.b32.xlu0 %v1117, 14
        %v1379 = vpop.permute.xlu0 %1378
        %1380 = vrot.lane.b32.xlu0 %v1196, 14
        %v1381 = vpop.permute.xlu0 %1380
        %1382 = vrot.lane.b32.xlu0 %v1275, 14
        %v1383 = vpop.permute.xlu0 %1382
        %1384 = vrot.lane.b32.xlu0 %v1354, 14
        %v1385 = vpop.permute.xlu0 %1384
        %vm1390 = vcmask 113664
        %v1391 = vsel %vm1390, %v1367, %v1379
        %v1392 = vsel %vm1390, %v1369, %v1381
        %v1393 = vsel %vm1390, %v1371, %v1383
        %v1394 = vsel %vm1390, %v1373, %v1385
        %v1395 = vand.u32 %v1361, 1
        %vm1396 = vcmp.eq.s32.totalorder %v1395, 1
        %v1397 = vsel %vm1396, 1, 0
        %vm1398 = vcmp.eq.s32.totalorder %v1397, 1
        %v1399 = vsel %vm1398, %v1391, %v1117
        %v1400 = vsel %vm1398, %v1392, %v1196
        %v1401 = vsel %vm1398, %v1393, %v1275
        %v1402 = vsel %vm1398, %v1394, %v1354
        %1407 = vrot.lane.b32.xlu0 %v1399, 126
        %v1408 = vpop.permute.xlu0 %1407
        %1409 = vrot.lane.b32.xlu0 %v1400, 126
        %v1410 = vpop.permute.xlu0 %1409
        %1411 = vrot.lane.b32.xlu0 %v1401, 126
        %v1412 = vpop.permute.xlu0 %1411
        %1413 = vrot.lane.b32.xlu0 %v1402, 126
        %v1414 = vpop.permute.xlu0 %1413
        %1419 = vrot.lane.b32.xlu0 %v1399, 13
        %v1420 = vpop.permute.xlu0 %1419
        %1421 = vrot.lane.b32.xlu0 %v1400, 13
        %v1422 = vpop.permute.xlu0 %1421
        %1423 = vrot.lane.b32.xlu0 %v1401, 13
        %v1424 = vpop.permute.xlu0 %1423
        %1425 = vrot.lane.b32.xlu0 %v1402, 13
        %v1426 = vpop.permute.xlu0 %1425
        %vm1431 = vcmask 105472
        %v1432 = vsel %vm1431, %v1408, %v1420
        %v1433 = vsel %vm1431, %v1410, %v1422
        %v1434 = vsel %vm1431, %v1412, %v1424
        %v1435 = vsel %vm1431, %v1414, %v1426
        %v1436 = vshra.s32 %v1361, 1
        %v1437 = vand.u32 %v1436, 1
        %vm1438 = vcmp.eq.s32.totalorder %v1437, 1
        %v1439 = vsel %vm1438, 1, 0
        %vm1440 = vcmp.eq.s32.totalorder %v1439, 1
        %v1441 = vsel %vm1440, %v1432, %v1399
        %v1442 = vsel %vm1440, %v1433, %v1400
        %v1443 = vsel %vm1440, %v1434, %v1401
        %v1444 = vsel %vm1440, %v1435, %v1402
        %1449 = vrot.lane.b32.xlu0 %v1441, 124
        %v1450 = vpop.permute.xlu0 %1449
        %1451 = vrot.lane.b32.xlu0 %v1442, 124
        %v1452 = vpop.permute.xlu0 %1451
        %1453 = vrot.lane.b32.xlu0 %v1443, 124
        %v1454 = vpop.permute.xlu0 %1453
        %1455 = vrot.lane.b32.xlu0 %v1444, 124
        %v1456 = vpop.permute.xlu0 %1455
        %1461 = vrot.lane.b32.xlu0 %v1441, 11
        %v1462 = vpop.permute.xlu0 %1461
        %1463 = vrot.lane.b32.xlu0 %v1442, 11
        %v1464 = vpop.permute.xlu0 %1463
        %1465 = vrot.lane.b32.xlu0 %v1443, 11
        %v1466 = vpop.permute.xlu0 %1465
        %1467 = vrot.lane.b32.xlu0 %v1444, 11
        %v1468 = vpop.permute.xlu0 %1467
        %vm1473 = vcmask 89088
        %v1474 = vsel %vm1473, %v1450, %v1462
        %v1475 = vsel %vm1473, %v1452, %v1464
        %v1476 = vsel %vm1473, %v1454, %v1466
        %v1477 = vsel %vm1473, %v1456, %v1468
        %v1478 = vshra.s32 %v1361, 2
        %v1479 = vand.u32 %v1478, 1
        %vm1480 = vcmp.eq.s32.totalorder %v1479, 1
        %v1481 = vsel %vm1480, 1, 0
        %vm1482 = vcmp.eq.s32.totalorder %v1481, 1
        %v1483 = vsel %vm1482, %v1474, %v1441
        %v1484 = vsel %vm1482, %v1475, %v1442
        %v1485 = vsel %vm1482, %v1476, %v1443
        %v1486 = vsel %vm1482, %v1477, %v1444
        %v1488 = vsel %vm1040, %v986, 0
        %v1490 = vsel %vm1040, %v818, 0
        %1492 = vmatprep.subr.mxu0 0.0
        %1493 = vmatpush1.xpose.msra.mxu0 0.0
        %1494 = vmatprep.subr.mxu0 0.0
        %1495 = vmatpush1.xpose.msra.mxu0 0.0
        %1496 = vmatprep.subr.mxu0 0.0
        %1497 = vmatpush1.xpose.msra.mxu0 0.0
        %1498 = vmatprep.subr.mxu0 0.0
        %1499 = vmatpush1.xpose.msra.mxu0 0.0
        %1500 = vmatprep.subr.mxu0 0.0
        %1501 = vmatpush1.xpose.msra.mxu0 0.0
        %1502 = vmatprep.subr.mxu0 0.0
        %1503 = vmatpush1.xpose.msra.mxu0 0.0
        %1504 = vmatprep.subr.mxu0 0.0
        %1505 = vmatpush1.xpose.msra.mxu0 0.0
        %1506 = vmatprep.subr.mxu0 0.0
        %1507 = vmatpush1.xpose.msra.mxu0 0.0
        %1508 = vmatprep.subr.mxu0 0.0
        %1509 = vmatpush1.xpose.msra.mxu0 0.0
        %1510 = vmatprep.subr.mxu0 0.0
        %1511 = vmatpush1.xpose.msra.mxu0 0.0
        %1512 = vmatprep.subr.mxu0 0.0
        %1513 = vmatpush1.xpose.msra.mxu0 0.0
        %1514 = vmatprep.subr.mxu0 0.0
        %1515 = vmatpush1.xpose.msra.mxu0 0.0
        %1516 = vmatprep.subr.mxu0 0.0
        %1517 = vmatpush1.xpose.msra.mxu0 0.0
        %1518 = vmatprep.subr.mxu0 0.0
        %1519 = vmatpush1.xpose.msra.mxu0 0.0
        %1520 = vmatprep.subr.mxu0 0.0
        %1521 = vmatpush1.xpose.msra.mxu0 0.0
        %1522 = vmatprep.subr.mxu0 0.0
        %1523 = vmatpush1.xpose.msra.mxu0 %v1490
        %1524 = vmatprep.subr.mxu0 0.0
        %1525 = vmatpush2.xpose.msra.mxu0 0.0
        %1526 = vmatprep.subr.mxu0 0.0
        %1527 = vmatpush2.xpose.msra.mxu0 0.0
        %1528 = vmatprep.subr.mxu0 0.0
        %1529 = vmatpush2.xpose.msra.mxu0 0.0
        %1530 = vmatprep.subr.mxu0 0.0
        %1531 = vmatpush2.xpose.msra.mxu0 0.0
        %1532 = vmatprep.subr.mxu0 0.0
        %1533 = vmatpush2.xpose.msra.mxu0 0.0
        %1534 = vmatprep.subr.mxu0 0.0
        %1535 = vmatpush2.xpose.msra.mxu0 0.0
        %1536 = vmatprep.subr.mxu0 0.0
        %1537 = vmatpush2.xpose.msra.mxu0 0.0
        %1538 = vmatprep.subr.mxu0 0.0
        %1539 = vmatpush2.xpose.msra.mxu0 0.0
        %1540 = vmatprep.subr.mxu0 0.0
        %1541 = vmatpush2.xpose.msra.mxu0 0.0
        %1542 = vmatprep.subr.mxu0 0.0
        %1543 = vmatpush2.xpose.msra.mxu0 0.0
        %1544 = vmatprep.subr.mxu0 0.0
        %1545 = vmatpush2.xpose.msra.mxu0 0.0
        %1546 = vmatprep.subr.mxu0 0.0
        %1547 = vmatpush2.xpose.msra.mxu0 0.0
        %1548 = vmatprep.subr.mxu0 0.0
        %1549 = vmatpush2.xpose.msra.mxu0 0.0
        %1550 = vmatprep.subr.mxu0 0.0
        %1551 = vmatpush2.xpose.msra.mxu0 0.0
        %1552 = vmatprep.subr.mxu0 0.0
        %1553 = vmatpush2.xpose.msra.mxu0 0.0
        %1554 = vmatprep.subr.mxu0 0.0
        %1555 = vmatpush2.xpose.msra.mxu0 0.0
        %1556 = vmatprep.mubr.f32.mxu0 0.0
        %1557 = vmatmul.mubr.f32.gmra.mxu0 %v1488
        %v1558 = vpop.f32.mrf.mxu0
        %v1559 = vadd.f32 %v1483, %v1558
        %v1560 = vpop.f32.mrf.mxu0
        %1561 = vdwg.mxu0
        %v1563 = vsel %vm1040, %v987, 0
        %v1565 = vsel %vm1040, %v917, 0
        %1567 = vmatprep.subr.mxu0 0.0
        %1568 = vmatpush1.xpose.msra.mxu0 0.0
        %1569 = vmatprep.subr.mxu0 0.0
        %1570 = vmatpush1.xpose.msra.mxu0 0.0
        %1571 = vmatprep.subr.mxu0 0.0
        %1572 = vmatpush1.xpose.msra.mxu0 0.0
        %1573 = vmatprep.subr.mxu0 0.0
        %1574 = vmatpush1.xpose.msra.mxu0 0.0
        %1575 = vmatprep.subr.mxu0 0.0
        %1576 = vmatpush1.xpose.msra.mxu0 0.0
        %1577 = vmatprep.subr.mxu0 0.0
        %1578 = vmatpush1.xpose.msra.mxu0 0.0
        %1579 = vmatprep.subr.mxu0 0.0
        %1580 = vmatpush1.xpose.msra.mxu0 0.0
        %1581 = vmatprep.subr.mxu0 0.0
        %1582 = vmatpush1.xpose.msra.mxu0 0.0
        %1583 = vmatprep.subr.mxu0 0.0
        %1584 = vmatpush1.xpose.msra.mxu0 0.0
        %1585 = vmatprep.subr.mxu0 0.0
        %1586 = vmatpush1.xpose.msra.mxu0 0.0
        %1587 = vmatprep.subr.mxu0 0.0
        %1588 = vmatpush1.xpose.msra.mxu0 0.0
        %1589 = vmatprep.subr.mxu0 0.0
        %1590 = vmatpush1.xpose.msra.mxu0 0.0
        %1591 = vmatprep.subr.mxu0 0.0
        %1592 = vmatpush1.xpose.msra.mxu0 0.0
        %1593 = vmatprep.subr.mxu0 0.0
        %1594 = vmatpush1.xpose.msra.mxu0 0.0
        %1595 = vmatprep.subr.mxu0 0.0
        %1596 = vmatpush1.xpose.msra.mxu0 0.0
        %1597 = vmatprep.subr.mxu0 0.0
        %1598 = vmatpush1.xpose.msra.mxu0 %v1565
        %1599 = vmatprep.subr.mxu0 0.0
        %1600 = vmatpush2.xpose.msra.mxu0 0.0
        %1601 = vmatprep.subr.mxu0 0.0
        %1602 = vmatpush2.xpose.msra.mxu0 0.0
        %1603 = vmatprep.subr.mxu0 0.0
        %1604 = vmatpush2.xpose.msra.mxu0 0.0
        %1605 = vmatprep.subr.mxu0 0.0
        %1606 = vmatpush2.xpose.msra.mxu0 0.0
        %1607 = vmatprep.subr.mxu0 0.0
        %1608 = vmatpush2.xpose.msra.mxu0 0.0
        %1609 = vmatprep.subr.mxu0 0.0
        %1610 = vmatpush2.xpose.msra.mxu0 0.0
        %1611 = vmatprep.subr.mxu0 0.0
        %1612 = vmatpush2.xpose.msra.mxu0 0.0
        %1613 = vmatprep.subr.mxu0 0.0
        %1614 = vmatpush2.xpose.msra.mxu0 0.0
        %1615 = vmatprep.subr.mxu0 0.0
        %1616 = vmatpush2.xpose.msra.mxu0 0.0
        %1617 = vmatprep.subr.mxu0 0.0
        %1618 = vmatpush2.xpose.msra.mxu0 0.0
        %1619 = vmatprep.subr.mxu0 0.0
        %1620 = vmatpush2.xpose.msra.mxu0 0.0
        %1621 = vmatprep.subr.mxu0 0.0
        %1622 = vmatpush2.xpose.msra.mxu0 0.0
        %1623 = vmatprep.subr.mxu0 0.0
        %1624 = vmatpush2.xpose.msra.mxu0 0.0
        %1625 = vmatprep.subr.mxu0 0.0
        %1626 = vmatpush2.xpose.msra.mxu0 0.0
        %1627 = vmatprep.subr.mxu0 0.0
        %1628 = vmatpush2.xpose.msra.mxu0 0.0
        %1629 = vmatprep.subr.mxu0 0.0
        %1630 = vmatpush2.xpose.msra.mxu0 0.0
        %1631 = vmatprep.mubr.f32.mxu0 0.0
        %1632 = vmatmul.mubr.f32.gmra.mxu0 %v1563
        %v1633 = vpop.f32.mrf.mxu0
        %v1634 = vadd.f32 %v1484, %v1633
        %v1635 = vpop.f32.mrf.mxu0
        %1636 = vdwg.mxu0
        %v1638 = vsel %vm1040, %v988, 0
        %v1640 = vsel %vm1040, %v919, 0
        %1642 = vmatprep.subr.mxu0 0.0
        %1643 = vmatpush1.xpose.msra.mxu0 0.0
        %1644 = vmatprep.subr.mxu0 0.0
        %1645 = vmatpush1.xpose.msra.mxu0 0.0
        %1646 = vmatprep.subr.mxu0 0.0
        %1647 = vmatpush1.xpose.msra.mxu0 0.0
        %1648 = vmatprep.subr.mxu0 0.0
        %1649 = vmatpush1.xpose.msra.mxu0 0.0
        %1650 = vmatprep.subr.mxu0 0.0
        %1651 = vmatpush1.xpose.msra.mxu0 0.0
        %1652 = vmatprep.subr.mxu0 0.0
        %1653 = vmatpush1.xpose.msra.mxu0 0.0
        %1654 = vmatprep.subr.mxu0 0.0
        %1655 = vmatpush1.xpose.msra.mxu0 0.0
        %1656 = vmatprep.subr.mxu0 0.0
        %1657 = vmatpush1.xpose.msra.mxu0 0.0
        %1658 = vmatprep.subr.mxu0 0.0
        %1659 = vmatpush1.xpose.msra.mxu0 0.0
        %1660 = vmatprep.subr.mxu0 0.0
        %1661 = vmatpush1.xpose.msra.mxu0 0.0
        %1662 = vmatprep.subr.mxu0 0.0
        %1663 = vmatpush1.xpose.msra.mxu0 0.0
        %1664 = vmatprep.subr.mxu0 0.0
        %1665 = vmatpush1.xpose.msra.mxu0 0.0
        %1666 = vmatprep.subr.mxu0 0.0
        %1667 = vmatpush1.xpose.msra.mxu0 0.0
        %1668 = vmatprep.subr.mxu0 0.0
        %1669 = vmatpush1.xpose.msra.mxu0 0.0
        %1670 = vmatprep.subr.mxu0 0.0
        %1671 = vmatpush1.xpose.msra.mxu0 0.0
        %1672 = vmatprep.subr.mxu0 0.0
        %1673 = vmatpush1.xpose.msra.mxu0 %v1640
        %1674 = vmatprep.subr.mxu0 0.0
        %1675 = vmatpush2.xpose.msra.mxu0 0.0
        %1676 = vmatprep.subr.mxu0 0.0
        %1677 = vmatpush2.xpose.msra.mxu0 0.0
        %1678 = vmatprep.subr.mxu0 0.0
        %1679 = vmatpush2.xpose.msra.mxu0 0.0
        %1680 = vmatprep.subr.mxu0 0.0
        %1681 = vmatpush2.xpose.msra.mxu0 0.0
        %1682 = vmatprep.subr.mxu0 0.0
        %1683 = vmatpush2.xpose.msra.mxu0 0.0
        %1684 = vmatprep.subr.mxu0 0.0
        %1685 = vmatpush2.xpose.msra.mxu0 0.0
        %1686 = vmatprep.subr.mxu0 0.0
        %1687 = vmatpush2.xpose.msra.mxu0 0.0
        %1688 = vmatprep.subr.mxu0 0.0
        %1689 = vmatpush2.xpose.msra.mxu0 0.0
        %1690 = vmatprep.subr.mxu0 0.0
        %1691 = vmatpush2.xpose.msra.mxu0 0.0
        %1692 = vmatprep.subr.mxu0 0.0
        %1693 = vmatpush2.xpose.msra.mxu0 0.0
        %1694 = vmatprep.subr.mxu0 0.0
        %1695 = vmatpush2.xpose.msra.mxu0 0.0
        %1696 = vmatprep.subr.mxu0 0.0
        %1697 = vmatpush2.xpose.msra.mxu0 0.0
        %1698 = vmatprep.subr.mxu0 0.0
        %1699 = vmatpush2.xpose.msra.mxu0 0.0
        %1700 = vmatprep.subr.mxu0 0.0
        %1701 = vmatpush2.xpose.msra.mxu0 0.0
        %1702 = vmatprep.subr.mxu0 0.0
        %1703 = vmatpush2.xpose.msra.mxu0 0.0
        %1704 = vmatprep.subr.mxu0 0.0
        %1705 = vmatpush2.xpose.msra.mxu0 0.0
        %1706 = vmatprep.mubr.f32.mxu0 0.0
        %1707 = vmatmul.mubr.f32.gmra.mxu0 %v1638
        %v1708 = vpop.f32.mrf.mxu0
        %v1709 = vadd.f32 %v1485, %v1708
        %v1710 = vpop.f32.mrf.mxu0
        %1711 = vdwg.mxu0
        %v1713 = vsel %vm1040, %v989, 0
        %v1715 = vsel %vm1040, %v921, 0
        %1717 = vmatprep.subr.mxu0 0.0
        %1718 = vmatpush1.xpose.msra.mxu0 0.0
        %1719 = vmatprep.subr.mxu0 0.0
        %1720 = vmatpush1.xpose.msra.mxu0 0.0
        %1721 = vmatprep.subr.mxu0 0.0
        %1722 = vmatpush1.xpose.msra.mxu0 0.0
        %1723 = vmatprep.subr.mxu0 0.0
        %1724 = vmatpush1.xpose.msra.mxu0 0.0
        %1725 = vmatprep.subr.mxu0 0.0
        %1726 = vmatpush1.xpose.msra.mxu0 0.0
        %1727 = vmatprep.subr.mxu0 0.0
        %1728 = vmatpush1.xpose.msra.mxu0 0.0
        %1729 = vmatprep.subr.mxu0 0.0
        %1730 = vmatpush1.xpose.msra.mxu0 0.0
        %1731 = vmatprep.subr.mxu0 0.0
        %1732 = vmatpush1.xpose.msra.mxu0 0.0
        %1733 = vmatprep.subr.mxu0 0.0
        %1734 = vmatpush1.xpose.msra.mxu0 0.0
        %1735 = vmatprep.subr.mxu0 0.0
        %1736 = vmatpush1.xpose.msra.mxu0 0.0
        %1737 = vmatprep.subr.mxu0 0.0
        %1738 = vmatpush1.xpose.msra.mxu0 0.0
        %1739 = vmatprep.subr.mxu0 0.0
        %1740 = vmatpush1.xpose.msra.mxu0 0.0
        %1741 = vmatprep.subr.mxu0 0.0
        %1742 = vmatpush1.xpose.msra.mxu0 0.0
        %1743 = vmatprep.subr.mxu0 0.0
        %1744 = vmatpush1.xpose.msra.mxu0 0.0
        %1745 = vmatprep.subr.mxu0 0.0
        %1746 = vmatpush1.xpose.msra.mxu0 0.0
        %1747 = vmatprep.subr.mxu0 0.0
        %1748 = vmatpush1.xpose.msra.mxu0 %v1715
        %1749 = vmatprep.subr.mxu0 0.0
        %1750 = vmatpush2.xpose.msra.mxu0 0.0
        %1751 = vmatprep.subr.mxu0 0.0
        %1752 = vmatpush2.xpose.msra.mxu0 0.0
        %1753 = vmatprep.subr.mxu0 0.0
        %1754 = vmatpush2.xpose.msra.mxu0 0.0
        %1755 = vmatprep.subr.mxu0 0.0
        %1756 = vmatpush2.xpose.msra.mxu0 0.0
        %1757 = vmatprep.subr.mxu0 0.0
        %1758 = vmatpush2.xpose.msra.mxu0 0.0
        %1759 = vmatprep.subr.mxu0 0.0
        %1760 = vmatpush2.xpose.msra.mxu0 0.0
        %1761 = vmatprep.subr.mxu0 0.0
        %1762 = vmatpush2.xpose.msra.mxu0 0.0
        %1763 = vmatprep.subr.mxu0 0.0
        %1764 = vmatpush2.xpose.msra.mxu0 0.0
        %1765 = vmatprep.subr.mxu0 0.0
        %1766 = vmatpush2.xpose.msra.mxu0 0.0
        %1767 = vmatprep.subr.mxu0 0.0
        %1768 = vmatpush2.xpose.msra.mxu0 0.0
        %1769 = vmatprep.subr.mxu0 0.0
        %1770 = vmatpush2.xpose.msra.mxu0 0.0
        %1771 = vmatprep.subr.mxu0 0.0
        %1772 = vmatpush2.xpose.msra.mxu0 0.0
        %1773 = vmatprep.subr.mxu0 0.0
        %1774 = vmatpush2.xpose.msra.mxu0 0.0
        %1775 = vmatprep.subr.mxu0 0.0
        %1776 = vmatpush2.xpose.msra.mxu0 0.0
        %1777 = vmatprep.subr.mxu0 0.0
        %1778 = vmatpush2.xpose.msra.mxu0 0.0
        %1779 = vmatprep.subr.mxu0 0.0
        %1780 = vmatpush2.xpose.msra.mxu0 0.0
        %1781 = vmatprep.mubr.f32.mxu0 0.0
        %1782 = vmatmul.mubr.f32.gmra.mxu0 %v1713
        %v1783 = vpop.f32.mrf.mxu0
        %v1784 = vadd.f32 %v1486, %v1783
        %v1785 = vpop.f32.mrf.mxu0
        %1786 = vdwg.mxu0
        %v1787 = vmul.f32 %v1559, 0.35355338
        %v1788 = vmul.f32 %v1634, 0.35355338
        %v1789 = vmul.f32 %v1709, 0.35355338
        %v1790 = vmul.f32 %v1784, 0.35355338
        %v1791 = vsel %vm651, 1, 0
        %v1792 = vlaneseq
        %v1793 = vshrl.u32 %v1792, 7
        %v1794 = vsub.s32 0, %v1793
        %v1795 = vrot.slane %v1791, %v1794
        %vm1796 = vcmp.eq.s32.totalorder %v1795, 1
        %v1797 = vsel %vm1796, %v1787, -3.4028235e+38
        %v1798 = vsel %vm1796, %v1788, -3.4028235e+38
        %v1799 = vsel %vm1796, %v1789, -3.4028235e+38
        %v1800 = vsel %vm1796, %v1790, -3.4028235e+38
        %v1801 = vsel %vm1040, %v1797, -inf
        %1802 = vmax.xlane.f32.xlu0 %v1801
        %v1803 = vpop.xlane.xlu0 %1802
        %v1804 = vsel %vm1040, %v1798, -inf
        %1805 = vmax.xlane.f32.xlu0 %v1804
        %v1806 = vpop.xlane.xlu0 %1805
        %v1807 = vsel %vm1040, %v1799, -inf
        %1808 = vmax.xlane.f32.xlu0 %v1807
        %v1809 = vpop.xlane.xlu0 %1808
        %v1810 = vsel %vm1040, %v1800, -inf
        %1811 = vmax.xlane.f32.xlu0 %v1810
        %v1812 = vpop.xlane.xlu0 %1811
        %v1813 = vsub.f32 %v1797, %v1803
        %v1814 = vsub.f32 %v1798, %v1806
        %v1815 = vsub.f32 %v1799, %v1809
        %v1816 = vsub.f32 %v1800, %v1812
        %v1817 = vmul.f32 %v1813, 1.442695
        %v1818 = vpow.pop %v1817
        %v1819 = vmul.f32 %v1814, 1.442695
        %v1820 = vpow.pop %v1819
        %v1821 = vmul.f32 %v1815, 1.442695
        %v1822 = vpow.pop %v1821
        %v1823 = vmul.f32 %v1816, 1.442695
        %v1824 = vpow.pop %v1823
        %v1825 = vsel %vm1040, %v1818, 0.0
        %1826 = vadd.xlane.f32.xlu0 %v1825
        %v1827 = vpop.xlane.xlu0 %1826
        %v1828 = vsel %vm1040, %v1820, 0.0
        %1829 = vadd.xlane.f32.xlu0 %v1828
        %v1830 = vpop.xlane.xlu0 %1829
        %v1831 = vsel %vm1040, %v1822, 0.0
        %1832 = vadd.xlane.f32.xlu0 %v1831
        %v1833 = vpop.xlane.xlu0 %1832
        %v1834 = vsel %vm1040, %v1824, 0.0
        %1835 = vadd.xlane.f32.xlu0 %v1834
        %v1836 = vpop.xlane.xlu0 %1835
        %v1837 = vrcp.pop %v1827
        %v1838 = vrcp.pop %v1830
        %v1839 = vrcp.pop %v1833
        %v1840 = vrcp.pop %v1836
        %v1841 = vmul.f32 %v1818, %v1837
        %v1842 = vmul.f32 %v1820, %v1838
        %v1843 = vmul.f32 %v1822, %v1839
        %v1844 = vmul.f32 %v1824, %v1840
        %v1845 = vsel %vm1796, %v1841, 0.0
        %v1846 = vsel %vm1796, %v1842, 0.0
        %v1847 = vsel %vm1796, %v1843, 0.0
        %v1848 = vsel %vm1796, %v1844, 0.0
        %v1850 = vsel %vm1040, %v1845, 0
        %1852 = vmatprep.subr.mxu0 0.0
        %1853 = vmatpush1.msra.mxu0 0.0
        %1854 = vmatprep.subr.mxu0 0.0
        %1855 = vmatpush1.msra.mxu0 0.0
        %1856 = vmatprep.subr.mxu0 0.0
        %1857 = vmatpush1.msra.mxu0 0.0
        %1858 = vmatprep.subr.mxu0 0.0
        %1859 = vmatpush1.msra.mxu0 0.0
        %1860 = vmatprep.subr.mxu0 0.0
        %1861 = vmatpush1.msra.mxu0 0.0
        %1862 = vmatprep.subr.mxu0 0.0
        %1863 = vmatpush1.msra.mxu0 0.0
        %1864 = vmatprep.subr.mxu0 0.0
        %1865 = vmatpush1.msra.mxu0 0.0
        %1866 = vmatprep.subr.mxu0 0.0
        %1867 = vmatpush1.msra.mxu0 0.0
        %1868 = vmatprep.subr.mxu0 0.0
        %1869 = vmatpush1.msra.mxu0 0.0
        %1870 = vmatprep.subr.mxu0 0.0
        %1871 = vmatpush1.msra.mxu0 0.0
        %1872 = vmatprep.subr.mxu0 0.0
        %1873 = vmatpush1.msra.mxu0 0.0
        %1874 = vmatprep.subr.mxu0 0.0
        %1875 = vmatpush1.msra.mxu0 0.0
        %1876 = vmatprep.subr.mxu0 0.0
        %1877 = vmatpush1.msra.mxu0 0.0
        %1878 = vmatprep.subr.mxu0 0.0
        %1879 = vmatpush1.msra.mxu0 0.0
        %1880 = vmatprep.subr.mxu0 0.0
        %1881 = vmatpush1.msra.mxu0 0.0
        %1882 = vmatprep.subr.mxu0 0.0
        %1883 = vmatpush1.msra.mxu0 %v902
        %1884 = vmatprep.subr.mxu0 0.0
        %1885 = vmatpush2.msra.mxu0 0.0
        %1886 = vmatprep.subr.mxu0 0.0
        %1887 = vmatpush2.msra.mxu0 0.0
        %1888 = vmatprep.subr.mxu0 0.0
        %1889 = vmatpush2.msra.mxu0 0.0
        %1890 = vmatprep.subr.mxu0 0.0
        %1891 = vmatpush2.msra.mxu0 0.0
        %1892 = vmatprep.subr.mxu0 0.0
        %1893 = vmatpush2.msra.mxu0 0.0
        %1894 = vmatprep.subr.mxu0 0.0
        %1895 = vmatpush2.msra.mxu0 0.0
        %1896 = vmatprep.subr.mxu0 0.0
        %1897 = vmatpush2.msra.mxu0 0.0
        %1898 = vmatprep.subr.mxu0 0.0
        %1899 = vmatpush2.msra.mxu0 0.0
        %1900 = vmatprep.subr.mxu0 0.0
        %1901 = vmatpush2.msra.mxu0 0.0
        %1902 = vmatprep.subr.mxu0 0.0
        %1903 = vmatpush2.msra.mxu0 0.0
        %1904 = vmatprep.subr.mxu0 0.0
        %1905 = vmatpush2.msra.mxu0 0.0
        %1906 = vmatprep.subr.mxu0 0.0
        %1907 = vmatpush2.msra.mxu0 0.0
        %1908 = vmatprep.subr.mxu0 0.0
        %1909 = vmatpush2.msra.mxu0 0.0
        %1910 = vmatprep.subr.mxu0 0.0
        %1911 = vmatpush2.msra.mxu0 0.0
        %1912 = vmatprep.subr.mxu0 0.0
        %1913 = vmatpush2.msra.mxu0 0.0
        %1914 = vmatprep.subr.mxu0 0.0
        %1915 = vmatpush2.msra.mxu0 0.0
        %1916 = vmatprep.mubr.f32.mxu0 0.0
        %1917 = vmatmul.mubr.f32.gmra.mxu0 %v1850
        %v1918 = vpop.f32.mrf.mxu0
        %v1919 = vadd.f32 0.0, %v1918
        %v1920 = vpop.f32.mrf.mxu0
        %1921 = vdwg.mxu0
        %v1923 = vsel %vm1040, %v1846, 0
        %1925 = vmatprep.subr.mxu0 0.0
        %1926 = vmatpush1.msra.mxu0 0.0
        %1927 = vmatprep.subr.mxu0 0.0
        %1928 = vmatpush1.msra.mxu0 0.0
        %1929 = vmatprep.subr.mxu0 0.0
        %1930 = vmatpush1.msra.mxu0 0.0
        %1931 = vmatprep.subr.mxu0 0.0
        %1932 = vmatpush1.msra.mxu0 0.0
        %1933 = vmatprep.subr.mxu0 0.0
        %1934 = vmatpush1.msra.mxu0 0.0
        %1935 = vmatprep.subr.mxu0 0.0
        %1936 = vmatpush1.msra.mxu0 0.0
        %1937 = vmatprep.subr.mxu0 0.0
        %1938 = vmatpush1.msra.mxu0 0.0
        %1939 = vmatprep.subr.mxu0 0.0
        %1940 = vmatpush1.msra.mxu0 0.0
        %1941 = vmatprep.subr.mxu0 0.0
        %1942 = vmatpush1.msra.mxu0 0.0
        %1943 = vmatprep.subr.mxu0 0.0
        %1944 = vmatpush1.msra.mxu0 0.0
        %1945 = vmatprep.subr.mxu0 0.0
        %1946 = vmatpush1.msra.mxu0 0.0
        %1947 = vmatprep.subr.mxu0 0.0
        %1948 = vmatpush1.msra.mxu0 0.0
        %1949 = vmatprep.subr.mxu0 0.0
        %1950 = vmatpush1.msra.mxu0 0.0
        %1951 = vmatprep.subr.mxu0 0.0
        %1952 = vmatpush1.msra.mxu0 0.0
        %1953 = vmatprep.subr.mxu0 0.0
        %1954 = vmatpush1.msra.mxu0 0.0
        %1955 = vmatprep.subr.mxu0 0.0
        %1956 = vmatpush1.msra.mxu0 %v924
        %1957 = vmatprep.subr.mxu0 0.0
        %1958 = vmatpush2.msra.mxu0 0.0
        %1959 = vmatprep.subr.mxu0 0.0
        %1960 = vmatpush2.msra.mxu0 0.0
        %1961 = vmatprep.subr.mxu0 0.0
        %1962 = vmatpush2.msra.mxu0 0.0
        %1963 = vmatprep.subr.mxu0 0.0
        %1964 = vmatpush2.msra.mxu0 0.0
        %1965 = vmatprep.subr.mxu0 0.0
        %1966 = vmatpush2.msra.mxu0 0.0
        %1967 = vmatprep.subr.mxu0 0.0
        %1968 = vmatpush2.msra.mxu0 0.0
        %1969 = vmatprep.subr.mxu0 0.0
        %1970 = vmatpush2.msra.mxu0 0.0
        %1971 = vmatprep.subr.mxu0 0.0
        %1972 = vmatpush2.msra.mxu0 0.0
        %1973 = vmatprep.subr.mxu0 0.0
        %1974 = vmatpush2.msra.mxu0 0.0
        %1975 = vmatprep.subr.mxu0 0.0
        %1976 = vmatpush2.msra.mxu0 0.0
        %1977 = vmatprep.subr.mxu0 0.0
        %1978 = vmatpush2.msra.mxu0 0.0
        %1979 = vmatprep.subr.mxu0 0.0
        %1980 = vmatpush2.msra.mxu0 0.0
        %1981 = vmatprep.subr.mxu0 0.0
        %1982 = vmatpush2.msra.mxu0 0.0
        %1983 = vmatprep.subr.mxu0 0.0
        %1984 = vmatpush2.msra.mxu0 0.0
        %1985 = vmatprep.subr.mxu0 0.0
        %1986 = vmatpush2.msra.mxu0 0.0
        %1987 = vmatprep.subr.mxu0 0.0
        %1988 = vmatpush2.msra.mxu0 0.0
        %1989 = vmatprep.mubr.f32.mxu0 0.0
        %1990 = vmatmul.mubr.f32.gmra.mxu0 %v1923
        %v1991 = vpop.f32.mrf.mxu0
        %v1992 = vadd.f32 0.0, %v1991
        %v1993 = vpop.f32.mrf.mxu0
        %1994 = vdwg.mxu0
        %v1996 = vsel %vm1040, %v1847, 0
        %1998 = vmatprep.subr.mxu0 0.0
        %1999 = vmatpush1.msra.mxu0 0.0
        %2000 = vmatprep.subr.mxu0 0.0
        %2001 = vmatpush1.msra.mxu0 0.0
        %2002 = vmatprep.subr.mxu0 0.0
        %2003 = vmatpush1.msra.mxu0 0.0
        %2004 = vmatprep.subr.mxu0 0.0
        %2005 = vmatpush1.msra.mxu0 0.0
        %2006 = vmatprep.subr.mxu0 0.0
        %2007 = vmatpush1.msra.mxu0 0.0
        %2008 = vmatprep.subr.mxu0 0.0
        %2009 = vmatpush1.msra.mxu0 0.0
        %2010 = vmatprep.subr.mxu0 0.0
        %2011 = vmatpush1.msra.mxu0 0.0
        %2012 = vmatprep.subr.mxu0 0.0
        %2013 = vmatpush1.msra.mxu0 0.0
        %2014 = vmatprep.subr.mxu0 0.0
        %2015 = vmatpush1.msra.mxu0 0.0
        %2016 = vmatprep.subr.mxu0 0.0
        %2017 = vmatpush1.msra.mxu0 0.0
        %2018 = vmatprep.subr.mxu0 0.0
        %2019 = vmatpush1.msra.mxu0 0.0
        %2020 = vmatprep.subr.mxu0 0.0
        %2021 = vmatpush1.msra.mxu0 0.0
        %2022 = vmatprep.subr.mxu0 0.0
        %2023 = vmatpush1.msra.mxu0 0.0
        %2024 = vmatprep.subr.mxu0 0.0
        %2025 = vmatpush1.msra.mxu0 0.0
        %2026 = vmatprep.subr.mxu0 0.0
        %2027 = vmatpush1.msra.mxu0 0.0
        %2028 = vmatprep.subr.mxu0 0.0
        %2029 = vmatpush1.msra.mxu0 %v927
        %2030 = vmatprep.subr.mxu0 0.0
        %2031 = vmatpush2.msra.mxu0 0.0
        %2032 = vmatprep.subr.mxu0 0.0
        %2033 = vmatpush2.msra.mxu0 0.0
        %2034 = vmatprep.subr.mxu0 0.0
        %2035 = vmatpush2.msra.mxu0 0.0
        %2036 = vmatprep.subr.mxu0 0.0
        %2037 = vmatpush2.msra.mxu0 0.0
        %2038 = vmatprep.subr.mxu0 0.0
        %2039 = vmatpush2.msra.mxu0 0.0
        %2040 = vmatprep.subr.mxu0 0.0
        %2041 = vmatpush2.msra.mxu0 0.0
        %2042 = vmatprep.subr.mxu0 0.0
        %2043 = vmatpush2.msra.mxu0 0.0
        %2044 = vmatprep.subr.mxu0 0.0
        %2045 = vmatpush2.msra.mxu0 0.0
        %2046 = vmatprep.subr.mxu0 0.0
        %2047 = vmatpush2.msra.mxu0 0.0
        %2048 = vmatprep.subr.mxu0 0.0
        %2049 = vmatpush2.msra.mxu0 0.0
        %2050 = vmatprep.subr.mxu0 0.0
        %2051 = vmatpush2.msra.mxu0 0.0
        %2052 = vmatprep.subr.mxu0 0.0
        %2053 = vmatpush2.msra.mxu0 0.0
        %2054 = vmatprep.subr.mxu0 0.0
        %2055 = vmatpush2.msra.mxu0 0.0
        %2056 = vmatprep.subr.mxu0 0.0
        %2057 = vmatpush2.msra.mxu0 0.0
        %2058 = vmatprep.subr.mxu0 0.0
        %2059 = vmatpush2.msra.mxu0 0.0
        %2060 = vmatprep.subr.mxu0 0.0
        %2061 = vmatpush2.msra.mxu0 0.0
        %2062 = vmatprep.mubr.f32.mxu0 0.0
        %2063 = vmatmul.mubr.f32.gmra.mxu0 %v1996
        %v2064 = vpop.f32.mrf.mxu0
        %v2065 = vadd.f32 0.0, %v2064
        %v2066 = vpop.f32.mrf.mxu0
        %2067 = vdwg.mxu0
        %v2069 = vsel %vm1040, %v1848, 0
        %2071 = vmatprep.subr.mxu0 0.0
        %2072 = vmatpush1.msra.mxu0 0.0
        %2073 = vmatprep.subr.mxu0 0.0
        %2074 = vmatpush1.msra.mxu0 0.0
        %2075 = vmatprep.subr.mxu0 0.0
        %2076 = vmatpush1.msra.mxu0 0.0
        %2077 = vmatprep.subr.mxu0 0.0
        %2078 = vmatpush1.msra.mxu0 0.0
        %2079 = vmatprep.subr.mxu0 0.0
        %2080 = vmatpush1.msra.mxu0 0.0
        %2081 = vmatprep.subr.mxu0 0.0
        %2082 = vmatpush1.msra.mxu0 0.0
        %2083 = vmatprep.subr.mxu0 0.0
        %2084 = vmatpush1.msra.mxu0 0.0
        %2085 = vmatprep.subr.mxu0 0.0
        %2086 = vmatpush1.msra.mxu0 0.0
        %2087 = vmatprep.subr.mxu0 0.0
        %2088 = vmatpush1.msra.mxu0 0.0
        %2089 = vmatprep.subr.mxu0 0.0
        %2090 = vmatpush1.msra.mxu0 0.0
        %2091 = vmatprep.subr.mxu0 0.0
        %2092 = vmatpush1.msra.mxu0 0.0
        %2093 = vmatprep.subr.mxu0 0.0
        %2094 = vmatpush1.msra.mxu0 0.0
        %2095 = vmatprep.subr.mxu0 0.0
        %2096 = vmatpush1.msra.mxu0 0.0
        %2097 = vmatprep.subr.mxu0 0.0
        %2098 = vmatpush1.msra.mxu0 0.0
        %2099 = vmatprep.subr.mxu0 0.0
        %2100 = vmatpush1.msra.mxu0 0.0
        %2101 = vmatprep.subr.mxu0 0.0
        %2102 = vmatpush1.msra.mxu0 %v930
        %2103 = vmatprep.subr.mxu0 0.0
        %2104 = vmatpush2.msra.mxu0 0.0
        %2105 = vmatprep.subr.mxu0 0.0
        %2106 = vmatpush2.msra.mxu0 0.0
        %2107 = vmatprep.subr.mxu0 0.0
        %2108 = vmatpush2.msra.mxu0 0.0
        %2109 = vmatprep.subr.mxu0 0.0
        %2110 = vmatpush2.msra.mxu0 0.0
        %2111 = vmatprep.subr.mxu0 0.0
        %2112 = vmatpush2.msra.mxu0 0.0
        %2113 = vmatprep.subr.mxu0 0.0
        %2114 = vmatpush2.msra.mxu0 0.0
        %2115 = vmatprep.subr.mxu0 0.0
        %2116 = vmatpush2.msra.mxu0 0.0
        %2117 = vmatprep.subr.mxu0 0.0
        %2118 = vmatpush2.msra.mxu0 0.0
        %2119 = vmatprep.subr.mxu0 0.0
        %2120 = vmatpush2.msra.mxu0 0.0
        %2121 = vmatprep.subr.mxu0 0.0
        %2122 = vmatpush2.msra.mxu0 0.0
        %2123 = vmatprep.subr.mxu0 0.0
        %2124 = vmatpush2.msra.mxu0 0.0
        %2125 = vmatprep.subr.mxu0 0.0
        %2126 = vmatpush2.msra.mxu0 0.0
        %2127 = vmatprep.subr.mxu0 0.0
        %2128 = vmatpush2.msra.mxu0 0.0
        %2129 = vmatprep.subr.mxu0 0.0
        %2130 = vmatpush2.msra.mxu0 0.0
        %2131 = vmatprep.subr.mxu0 0.0
        %2132 = vmatpush2.msra.mxu0 0.0
        %2133 = vmatprep.subr.mxu0 0.0
        %2134 = vmatpush2.msra.mxu0 0.0
        %2135 = vmatprep.mubr.f32.mxu0 0.0
        %2136 = vmatmul.mubr.f32.gmra.mxu0 %v2069
        %v2137 = vpop.f32.mrf.mxu0
        %v2138 = vadd.f32 0.0, %v2137
        %v2139 = vpop.f32.mrf.mxu0
        %2140 = vdwg.mxu0
        %v2141 = vld [vmem:[#allocation10] sm:$0xff]
        %s2142 = scalar_lea.vmem [#allocation10], 8
        %v2143 = vld [vmem:[%s2142] sm:$0xff]
        %v2145 = vsel %vm1040, %v1992, 0
        %2147 = vmatprep.subr.mxu0 0.0
        %2148 = vmatpush1.msra.mxu0 0.0
        %2149 = vmatprep.subr.mxu0 0.0
        %2150 = vmatpush1.msra.mxu0 0.0
        %2151 = vmatprep.subr.mxu0 0.0
        %2152 = vmatpush1.msra.mxu0 0.0
        %2153 = vmatprep.subr.mxu0 0.0
        %2154 = vmatpush1.msra.mxu0 0.0
        %2155 = vmatprep.subr.mxu0 0.0
        %2156 = vmatpush1.msra.mxu0 0.0
        %2157 = vmatprep.subr.mxu0 0.0
        %2158 = vmatpush1.msra.mxu0 0.0
        %2159 = vmatprep.subr.mxu0 0.0
        %2160 = vmatpush1.msra.mxu0 0.0
        %2161 = vmatprep.subr.mxu0 0.0
        %2162 = vmatpush1.msra.mxu0 0.0
        %2163 = vmatprep.subr.mxu0 0.0
        %2164 = vmatpush1.msra.mxu0 0.0
        %2165 = vmatprep.subr.mxu0 0.0
        %2166 = vmatpush1.msra.mxu0 0.0
        %2167 = vmatprep.subr.mxu0 0.0
        %2168 = vmatpush1.msra.mxu0 0.0
        %2169 = vmatprep.subr.mxu0 0.0
        %2170 = vmatpush1.msra.mxu0 0.0
        %2171 = vmatprep.subr.mxu0 0.0
        %2172 = vmatpush1.msra.mxu0 0.0
        %2173 = vmatprep.subr.mxu0 0.0
        %2174 = vmatpush1.msra.mxu0 0.0
        %2175 = vmatprep.subr.mxu0 0.0
        %2176 = vmatpush1.msra.mxu0 0.0
        %2177 = vmatprep.subr.mxu0 0.0
        %2178 = vmatpush1.msra.mxu0 %v2143
        %2179 = vmatprep.subr.mxu0 0.0
        %2180 = vmatpush2.msra.mxu0 0.0
        %2181 = vmatprep.subr.mxu0 0.0
        %2182 = vmatpush2.msra.mxu0 0.0
        %2183 = vmatprep.subr.mxu0 0.0
        %2184 = vmatpush2.msra.mxu0 0.0
        %2185 = vmatprep.subr.mxu0 0.0
        %2186 = vmatpush2.msra.mxu0 0.0
        %2187 = vmatprep.subr.mxu0 0.0
        %2188 = vmatpush2.msra.mxu0 0.0
        %2189 = vmatprep.subr.mxu0 0.0
        %2190 = vmatpush2.msra.mxu0 0.0
        %2191 = vmatprep.subr.mxu0 0.0
        %2192 = vmatpush2.msra.mxu0 0.0
        %2193 = vmatprep.subr.mxu0 0.0
        %2194 = vmatpush2.msra.mxu0 0.0
        %2195 = vmatprep.subr.mxu0 0.0
        %2196 = vmatpush2.msra.mxu0 0.0
        %2197 = vmatprep.subr.mxu0 0.0
        %2198 = vmatpush2.msra.mxu0 0.0
        %2199 = vmatprep.subr.mxu0 0.0
        %2200 = vmatpush2.msra.mxu0 0.0
        %2201 = vmatprep.subr.mxu0 0.0
        %2202 = vmatpush2.msra.mxu0 0.0
        %2203 = vmatprep.subr.mxu0 0.0
        %2204 = vmatpush2.msra.mxu0 0.0
        %2205 = vmatprep.subr.mxu0 0.0
        %2206 = vmatpush2.msra.mxu0 0.0
        %2207 = vmatprep.subr.mxu0 0.0
        %2208 = vmatpush2.msra.mxu0 0.0
        %2209 = vmatprep.subr.mxu0 0.0
        %2210 = vmatpush2.msra.mxu0 0.0
        %2211 = vmatprep.mubr.f32.mxu0 0.0
        %2212 = vmatmul.mubr.f32.gmra.mxu0 %v2145
        %v2213 = vpop.f32.mrf.mxu0
        %v2214 = vadd.f32 0.0, %v2213
        %v2215 = vpop.f32.mrf.mxu0
        %2216 = vdwg.mxu0
        %v2218 = vsel %vm1040, %v1919, 0
        %2220 = vmatprep.subr.mxu0 0.0
        %2221 = vmatpush1.msra.mxu0 0.0
        %2222 = vmatprep.subr.mxu0 0.0
        %2223 = vmatpush1.msra.mxu0 0.0
        %2224 = vmatprep.subr.mxu0 0.0
        %2225 = vmatpush1.msra.mxu0 0.0
        %2226 = vmatprep.subr.mxu0 0.0
        %2227 = vmatpush1.msra.mxu0 0.0
        %2228 = vmatprep.subr.mxu0 0.0
        %2229 = vmatpush1.msra.mxu0 0.0
        %2230 = vmatprep.subr.mxu0 0.0
        %2231 = vmatpush1.msra.mxu0 0.0
        %2232 = vmatprep.subr.mxu0 0.0
        %2233 = vmatpush1.msra.mxu0 0.0
        %2234 = vmatprep.subr.mxu0 0.0
        %2235 = vmatpush1.msra.mxu0 0.0
        %2236 = vmatprep.subr.mxu0 0.0
        %2237 = vmatpush1.msra.mxu0 0.0
        %2238 = vmatprep.subr.mxu0 0.0
        %2239 = vmatpush1.msra.mxu0 0.0
        %2240 = vmatprep.subr.mxu0 0.0
        %2241 = vmatpush1.msra.mxu0 0.0
        %2242 = vmatprep.subr.mxu0 0.0
        %2243 = vmatpush1.msra.mxu0 0.0
        %2244 = vmatprep.subr.mxu0 0.0
        %2245 = vmatpush1.msra.mxu0 0.0
        %2246 = vmatprep.subr.mxu0 0.0
        %2247 = vmatpush1.msra.mxu0 0.0
        %2248 = vmatprep.subr.mxu0 0.0
        %2249 = vmatpush1.msra.mxu0 0.0
        %2250 = vmatprep.subr.mxu0 0.0
        %2251 = vmatpush1.msra.mxu0 %v2141
        %2252 = vmatprep.subr.mxu0 0.0
        %2253 = vmatpush2.msra.mxu0 0.0
        %2254 = vmatprep.subr.mxu0 0.0
        %2255 = vmatpush2.msra.mxu0 0.0
        %2256 = vmatprep.subr.mxu0 0.0
        %2257 = vmatpush2.msra.mxu0 0.0
        %2258 = vmatprep.subr.mxu0 0.0
        %2259 = vmatpush2.msra.mxu0 0.0
        %2260 = vmatprep.subr.mxu0 0.0
        %2261 = vmatpush2.msra.mxu0 0.0
        %2262 = vmatprep.subr.mxu0 0.0
        %2263 = vmatpush2.msra.mxu0 0.0
        %2264 = vmatprep.subr.mxu0 0.0
        %2265 = vmatpush2.msra.mxu0 0.0
        %2266 = vmatprep.subr.mxu0 0.0
        %2267 = vmatpush2.msra.mxu0 0.0
        %2268 = vmatprep.subr.mxu0 0.0
        %2269 = vmatpush2.msra.mxu0 0.0
        %2270 = vmatprep.subr.mxu0 0.0
        %2271 = vmatpush2.msra.mxu0 0.0
        %2272 = vmatprep.subr.mxu0 0.0
        %2273 = vmatpush2.msra.mxu0 0.0
        %2274 = vmatprep.subr.mxu0 0.0
        %2275 = vmatpush2.msra.mxu0 0.0
        %2276 = vmatprep.subr.mxu0 0.0
        %2277 = vmatpush2.msra.mxu0 0.0
        %2278 = vmatprep.subr.mxu0 0.0
        %2279 = vmatpush2.msra.mxu0 0.0
        %2280 = vmatprep.subr.mxu0 0.0
        %2281 = vmatpush2.msra.mxu0 0.0
        %2282 = vmatprep.subr.mxu0 0.0
        %2283 = vmatpush2.msra.mxu0 0.0
        %2284 = vmatprep.mubr.f32.mxu0 0.0
        %2285 = vmatmul.mubr.f32.gmra.mxu0 %v2218
        %v2286 = vpop.f32.mrf.mxu0
        %v2287 = vadd.f32 %v2214, %v2286
        %v2288 = vpop.f32.mrf.mxu0
        %2289 = vdwg.mxu0
        %s2290 = scalar_lea.vmem [#allocation10], 16
        %v2291 = vld [vmem:[%s2290] sm:$0xff]
        %v2293 = vsel %vm1040, %v2065, 0
        %2295 = vmatprep.subr.mxu0 0.0
        %2296 = vmatpush1.msra.mxu0 0.0
        %2297 = vmatprep.subr.mxu0 0.0
        %2298 = vmatpush1.msra.mxu0 0.0
        %2299 = vmatprep.subr.mxu0 0.0
        %2300 = vmatpush1.msra.mxu0 0.0
        %2301 = vmatprep.subr.mxu0 0.0
        %2302 = vmatpush1.msra.mxu0 0.0
        %2303 = vmatprep.subr.mxu0 0.0
        %2304 = vmatpush1.msra.mxu0 0.0
        %2305 = vmatprep.subr.mxu0 0.0
        %2306 = vmatpush1.msra.mxu0 0.0
        %2307 = vmatprep.subr.mxu0 0.0
        %2308 = vmatpush1.msra.mxu0 0.0
        %2309 = vmatprep.subr.mxu0 0.0
        %2310 = vmatpush1.msra.mxu0 0.0
        %2311 = vmatprep.subr.mxu0 0.0
        %2312 = vmatpush1.msra.mxu0 0.0
        %2313 = vmatprep.subr.mxu0 0.0
        %2314 = vmatpush1.msra.mxu0 0.0
        %2315 = vmatprep.subr.mxu0 0.0
        %2316 = vmatpush1.msra.mxu0 0.0
        %2317 = vmatprep.subr.mxu0 0.0
        %2318 = vmatpush1.msra.mxu0 0.0
        %2319 = vmatprep.subr.mxu0 0.0
        %2320 = vmatpush1.msra.mxu0 0.0
        %2321 = vmatprep.subr.mxu0 0.0
        %2322 = vmatpush1.msra.mxu0 0.0
        %2323 = vmatprep.subr.mxu0 0.0
        %2324 = vmatpush1.msra.mxu0 0.0
        %2325 = vmatprep.subr.mxu0 0.0
        %2326 = vmatpush1.msra.mxu0 %v2291
        %2327 = vmatprep.subr.mxu0 0.0
        %2328 = vmatpush2.msra.mxu0 0.0
        %2329 = vmatprep.subr.mxu0 0.0
        %2330 = vmatpush2.msra.mxu0 0.0
        %2331 = vmatprep.subr.mxu0 0.0
        %2332 = vmatpush2.msra.mxu0 0.0
        %2333 = vmatprep.subr.mxu0 0.0
        %2334 = vmatpush2.msra.mxu0 0.0
        %2335 = vmatprep.subr.mxu0 0.0
        %2336 = vmatpush2.msra.mxu0 0.0
        %2337 = vmatprep.subr.mxu0 0.0
        %2338 = vmatpush2.msra.mxu0 0.0
        %2339 = vmatprep.subr.mxu0 0.0
        %2340 = vmatpush2.msra.mxu0 0.0
        %2341 = vmatprep.subr.mxu0 0.0
        %2342 = vmatpush2.msra.mxu0 0.0
        %2343 = vmatprep.subr.mxu0 0.0
        %2344 = vmatpush2.msra.mxu0 0.0
        %2345 = vmatprep.subr.mxu0 0.0
        %2346 = vmatpush2.msra.mxu0 0.0
        %2347 = vmatprep.subr.mxu0 0.0
        %2348 = vmatpush2.msra.mxu0 0.0
        %2349 = vmatprep.subr.mxu0 0.0
        %2350 = vmatpush2.msra.mxu0 0.0
        %2351 = vmatprep.subr.mxu0 0.0
        %2352 = vmatpush2.msra.mxu0 0.0
        %2353 = vmatprep.subr.mxu0 0.0
        %2354 = vmatpush2.msra.mxu0 0.0
        %2355 = vmatprep.subr.mxu0 0.0
        %2356 = vmatpush2.msra.mxu0 0.0
        %2357 = vmatprep.subr.mxu0 0.0
        %2358 = vmatpush2.msra.mxu0 0.0
        %2359 = vmatprep.mubr.f32.mxu0 0.0
        %2360 = vmatmul.mubr.f32.gmra.mxu0 %v2293
        %v2361 = vpop.f32.mrf.mxu0
        %v2362 = vadd.f32 0.0, %v2361
        %v2363 = vpop.f32.mrf.mxu0
        %2364 = vdwg.mxu0
        %v2365 = vadd.f32 %v2287, %v2362
        %s2366 = scalar_lea.vmem [#allocation10], 24
        %v2367 = vld [vmem:[%s2366] sm:$0xff]
        %v2369 = vsel %vm1040, %v2138, 0
        %2371 = vmatprep.subr.mxu0 0.0
        %2372 = vmatpush1.msra.mxu0 0.0
        %2373 = vmatprep.subr.mxu0 0.0
        %2374 = vmatpush1.msra.mxu0 0.0
        %2375 = vmatprep.subr.mxu0 0.0
        %2376 = vmatpush1.msra.mxu0 0.0
        %2377 = vmatprep.subr.mxu0 0.0
        %2378 = vmatpush1.msra.mxu0 0.0
        %2379 = vmatprep.subr.mxu0 0.0
        %2380 = vmatpush1.msra.mxu0 0.0
        %2381 = vmatprep.subr.mxu0 0.0
        %2382 = vmatpush1.msra.mxu0 0.0
        %2383 = vmatprep.subr.mxu0 0.0
        %2384 = vmatpush1.msra.mxu0 0.0
        %2385 = vmatprep.subr.mxu0 0.0
        %2386 = vmatpush1.msra.mxu0 0.0
        %2387 = vmatprep.subr.mxu0 0.0
        %2388 = vmatpush1.msra.mxu0 0.0
        %2389 = vmatprep.subr.mxu0 0.0
        %2390 = vmatpush1.msra.mxu0 0.0
        %2391 = vmatprep.subr.mxu0 0.0
        %2392 = vmatpush1.msra.mxu0 0.0
        %2393 = vmatprep.subr.mxu0 0.0
        %2394 = vmatpush1.msra.mxu0 0.0
        %2395 = vmatprep.subr.mxu0 0.0
        %2396 = vmatpush1.msra.mxu0 0.0
        %2397 = vmatprep.subr.mxu0 0.0
        %2398 = vmatpush1.msra.mxu0 0.0
        %2399 = vmatprep.subr.mxu0 0.0
        %2400 = vmatpush1.msra.mxu0 0.0
        %2401 = vmatprep.subr.mxu0 0.0
        %2402 = vmatpush1.msra.mxu0 %v2367
        %2403 = vmatprep.subr.mxu0 0.0
        %2404 = vmatpush2.msra.mxu0 0.0
        %2405 = vmatprep.subr.mxu0 0.0
        %2406 = vmatpush2.msra.mxu0 0.0
        %2407 = vmatprep.subr.mxu0 0.0
        %2408 = vmatpush2.msra.mxu0 0.0
        %2409 = vmatprep.subr.mxu0 0.0
        %2410 = vmatpush2.msra.mxu0 0.0
        %2411 = vmatprep.subr.mxu0 0.0
        %2412 = vmatpush2.msra.mxu0 0.0
        %2413 = vmatprep.subr.mxu0 0.0
        %2414 = vmatpush2.msra.mxu0 0.0
        %2415 = vmatprep.subr.mxu0 0.0
        %2416 = vmatpush2.msra.mxu0 0.0
        %2417 = vmatprep.subr.mxu0 0.0
        %2418 = vmatpush2.msra.mxu0 0.0
        %2419 = vmatprep.subr.mxu0 0.0
        %2420 = vmatpush2.msra.mxu0 0.0
        %2421 = vmatprep.subr.mxu0 0.0
        %2422 = vmatpush2.msra.mxu0 0.0
        %2423 = vmatprep.subr.mxu0 0.0
        %2424 = vmatpush2.msra.mxu0 0.0
        %2425 = vmatprep.subr.mxu0 0.0
        %2426 = vmatpush2.msra.mxu0 0.0
        %2427 = vmatprep.subr.mxu0 0.0
        %2428 = vmatpush2.msra.mxu0 0.0
        %2429 = vmatprep.subr.mxu0 0.0
        %2430 = vmatpush2.msra.mxu0 0.0
        %2431 = vmatprep.subr.mxu0 0.0
        %2432 = vmatpush2.msra.mxu0 0.0
        %2433 = vmatprep.subr.mxu0 0.0
        %2434 = vmatpush2.msra.mxu0 0.0
        %2435 = vmatprep.mubr.f32.mxu0 0.0
        %2436 = vmatmul.mubr.f32.gmra.mxu0 %v2369
        %v2437 = vpop.f32.mrf.mxu0
        %v2438 = vadd.f32 0.0, %v2437
        %v2439 = vpop.f32.mrf.mxu0
        %2440 = vdwg.mxu0
        %v2441 = vadd.f32 %v2365, %v2438
        %v2442 = vld [vmem:[%s12] sm:$0x1]
        %v2444 = vlaneseq
        %v2445 = vshrl.u32 %v2444, 7
        %v2446 = vsub.s32 0, %v2445
        %v2447 = vrot.slane %v2442, %v2446
        %v2449 = vadd.f32 %v2441, %v2447
        %2450 = vst.msk [vmem:[%s645] sm:$0xff] %vm663, %v2449
        %s2451 = sand.u32 %s397, 1
        %s2452 = scalar_lea.sflag [#allocation4], %s2451
        %s2453 = sand.u32 %s397, 1
        %s2454 = smul.addr %s2453, 8
        %s2455 = scalar_lea.vmem [#allocation11], %s2454
        // Predicated region
        $region101: #{tpu_custom_call.1} parent=79 // pred_check
          %p2456 = pneg %p407
        $region102: #{tpu_custom_call.1} parent=79 // pred_check_branch
          %2458 = sbr.rel (%p2456) target = $region104
        $region103: #{tpu_custom_call.1} parent=79 // pred_region
          %s2460 = ssub.s32 128, 128
          %2461 = vsyncadd %s2452, %s2460
          %s2462 = sadd.s32 %s43, %s42
          %s2463 = smul.addr %s2462, 128
          %s2464 = scalar_lea.hbm %s15, %s2463
          %s2466 = sshll.u32 %s2455, 4
          %s2467 = int_to_ptr.vmem [resolvable:$true] %s2466
          %2469 = dma.vmem_to_hbm [thread:$0]  %s2467, 128, %s2464, %s2452
        $region104: #{tpu_custom_call.1} parent=79 // pred_fallthru
          _
      $region80: #{tpu_custom_call.1} parent=5 // pred_fallthru
        _
      %p2470 = scmp.le.s32.totalorder 2, %s33
      // Predicated region
      $region105: #{tpu_custom_call.1} parent=5 // pred_check
        %p2471 = pneg %p2470
      $region106: #{tpu_custom_call.1} parent=5 // pred_check_branch
        %2473 = sbr.rel (%p2471) target = $region108
      $region107: #{tpu_custom_call.1} parent=5 // pred_region
        %s2474 = ssub.s32 %s33, 2
        // Predicated region
        $region109: #{tpu_custom_call.1} parent=107 // pred_check
          %p2475 = pneg %p413
        $region110: #{tpu_custom_call.1} parent=107 // pred_check_branch
          %2477 = sbr.rel (%p2475) target = $region112
        $region111: #{tpu_custom_call.1} parent=107 // pred_region
          %s2478 = sand.u32 %s398, 1
          %s2479 = scalar_lea.sflag [#allocation4], %s2478
          %s2480 = sand.u32 %s398, 1
          %s2481 = smul.addr %s2480, 8
          %s2482 = scalar_lea.vmem [#allocation11], %s2481
          %2483 = dma.done %s2479, 128
        $region112: #{tpu_custom_call.1} parent=107 // pred_fallthru
          _
      $region108: #{tpu_custom_call.1} parent=5 // pred_fallthru
        _
    $region6: #{tpu_custom_call.1} parent=1 // loop_footer
      %s37 = sadd.s32 1, %s33
    $region7: #{tpu_custom_call.1} parent=1 // loop_footer_branch
      %32 = sbr.rel target = $region3
    $region8: #{tpu_custom_call.1} parent=1 // loop_exit
      _
    %2484 = vsyncpa [#allocation3], 1
    %s2485 = scalar_lea.sflag [#allocation3], 1
    %2486 = vsyncpa %s2485, 1
    %2487 = vsyncpa [#allocation6], 1
    %s2488 = scalar_lea.sflag [#allocation6], 1
    %2489 = vsyncpa %s2488, 1
    %2490 = vsyncpa [#allocation9], 1
    %s2491 = scalar_lea.sflag [#allocation9], 1
    %2492 = vsyncpa %s2491, 1
    %2493 = vsyncpa [#allocation4], 1
    %s2494 = scalar_lea.sflag [#allocation4], 1
    %2495 = vsyncpa %s2494, 1

</llo_original>
